<compile_context>
chip_gen: v7x
topology: tpu7x:2x2x1
jax: 0.10.0
libtpu: 0.0.40
codegen_flags: <defaults>
</compile_context>

<pallas_src>
import functools
import math

import jax
import jax.numpy as jnp
from jax.experimental import pallas as pl
from jax.experimental.pallas import tpu as pltpu


# ----------------------------------------------------------------------------
# Pallas kernels
# ----------------------------------------------------------------------------
def _gemm_kernel(x_ref, w_ref, b_ref, o_ref, *, act):
    """o = act(x @ w + b). x/w are bf16 tiles, accumulation + epilogue in f32."""
    y = jnp.dot(x_ref[...], w_ref[...], preferred_element_type=jnp.float32)
    y = y + b_ref[...]
    if act == "relu":
        y = jnp.maximum(y, 0.0)
    o_ref[...] = y.astype(o_ref.dtype)


def _pick_tile_m(m, cap=512):
    """Largest tile <= cap that divides m and is a multiple of 8 (else m)."""
    if m <= cap:
        return m
    for tm in (512, 256, 128, 64, 32, 16, 8):
        if tm <= cap and m % tm == 0:
            return tm
    return m


def gemm(x, w, b, *, act="none", out_dtype=jnp.bfloat16):
    """(M,K)@(K,N)+b, M-tiled ('parallel') so the DMA pipeline / megacore engage."""
    M, K = x.shape
    Kw, N = w.shape
    assert K == Kw
    tm = _pick_tile_m(M)
    return pl.pallas_call(
        functools.partial(_gemm_kernel, act=act),
        grid=(M // tm,),
        out_shape=jax.ShapeDtypeStruct((M, N), out_dtype),
        in_specs=[
            pl.BlockSpec((tm, K), lambda i: (i, 0)),
            pl.BlockSpec((K, N), lambda i: (0, 0)),
            pl.BlockSpec((1, N), lambda i: (0, 0)),
        ],
        out_specs=pl.BlockSpec((tm, N), lambda i: (i, 0)),
        compiler_params=pltpu.CompilerParams(
            dimension_semantics=("parallel",)),
    )(x, w, b)


def _conv_bn_relu_kernel(x_ref, w_ref, b_ref, g_ref, be_ref, o_ref, *, eps):
    """Fused conv-GEMM + training-mode BatchNorm (over rows == N,H,W) + ReLU."""
    y = jnp.dot(x_ref[...], w_ref[...], preferred_element_type=jnp.float32)
    y = y + b_ref[...]
    mean = jnp.mean(y, axis=0, keepdims=True)
    var = jnp.mean(jnp.square(y - mean), axis=0, keepdims=True)  # biased var
    inv = g_ref[...] * jax.lax.rsqrt(var + eps)
    o_ref[...] = jnp.maximum((y - mean) * inv + be_ref[...], 0.0).astype(o_ref.dtype)


def conv_bn_relu_gemm(x, w, b, gamma, beta, *, eps=1e-5, out_dtype=jnp.bfloat16):
    """Whole (M,K)/(M,N) slabs stay in VMEM; BN statistics need all rows at once."""
    M, K = x.shape
    Kw, N = w.shape
    assert K == Kw
    return pl.pallas_call(
        functools.partial(_conv_bn_relu_kernel, eps=eps),
        grid=(1,),
        out_shape=jax.ShapeDtypeStruct((M, N), out_dtype),
        in_specs=[
            pl.BlockSpec((M, K), lambda i: (0, 0)),
            pl.BlockSpec((K, N), lambda i: (0, 0)),
            pl.BlockSpec((1, N), lambda i: (0, 0)),
            pl.BlockSpec((1, N), lambda i: (0, 0)),
            pl.BlockSpec((1, N), lambda i: (0, 0)),
        ],
        out_specs=pl.BlockSpec((M, N), lambda i: (0, 0)),
        compiler_params=pltpu.CompilerParams(
            dimension_semantics=("arbitrary",)),
    )(x, w, b, gamma, beta)


def _heads_kernel(cols_ref, wl_ref, bl_ref, w1_ref, b1_ref, w2_ref, b2_ref, o_ref):
    """Final conv (1x1 spatial) + all five head linears, fused.

    Output columns: [v | alpha(3) | beta(3)].
    """
    # feat = cols @ w_last + b_last   (== x.view(-1, cnn_out))
    feat = jnp.dot(cols_ref[...], wl_ref[...], preferred_element_type=jnp.float32)
    feat = feat + bl_ref[...]
    # shared first stage: ReLU -> [wv1 | wfc] -> ReLU
    h = jnp.maximum(feat, 0.0).astype(jnp.bfloat16)
    h1 = jnp.dot(h, w1_ref[...], preferred_element_type=jnp.float32) + b1_ref[...]
    h1 = jnp.maximum(h1, 0.0)
    # block-diagonal second stage: [wv2 | wa | wb]
    y2 = jnp.dot(h1.astype(jnp.bfloat16), w2_ref[...],
                 preferred_element_type=jnp.float32) + b2_ref[...]
    # numerically stable softplus(y) + 1 (applied only to alpha/beta columns)
    sp1 = jnp.maximum(y2, 0.0) + jnp.log(1.0 + jnp.exp(-jnp.abs(y2))) + 1.0
    col = jax.lax.broadcasted_iota(jnp.int32, y2.shape, 1)
    o_ref[...] = jnp.where(col == 0, y2, sp1).astype(o_ref.dtype)


def heads_fused(cols, wl, bl, w1, b1, w2, b2):
    B, K = cols.shape
    Nl = wl.shape[1]
    N1 = w1.shape[1]
    N2 = w2.shape[1]
    return pl.pallas_call(
        _heads_kernel,
        grid=(1,),
        out_shape=jax.ShapeDtypeStruct((B, N2), jnp.float32),
        in_specs=[
            pl.BlockSpec((B, K), lambda i: (0, 0)),
            pl.BlockSpec((K, Nl), lambda i: (0, 0)),
            pl.BlockSpec((1, Nl), lambda i: (0, 0)),
            pl.BlockSpec((Nl, N1), lambda i: (0, 0)),
            pl.BlockSpec((1, N1), lambda i: (0, 0)),
            pl.BlockSpec((N1, N2), lambda i: (0, 0)),
            pl.BlockSpec((1, N2), lambda i: (0, 0)),
        ],
        out_specs=pl.BlockSpec((B, N2), lambda i: (0, 0)),
        compiler_params=pltpu.CompilerParams(
            dimension_semantics=("arbitrary",)),
    )(cols, wl, bl, w1, b1, w2, b2)


# ----------------------------------------------------------------------------
# Glue: im2col (patch extraction stays in plain JAX; runs in bf16)
# ----------------------------------------------------------------------------
def im2col(x_nhwc, k, stride, pad):
    N, H, W, C = x_nhwc.shape
    xp = jnp.pad(x_nhwc, ((0, 0), (pad, pad), (pad, pad), (0, 0)))
    Ho = (H + 2 * pad - k) // stride + 1
    Wo = (W + 2 * pad - k) // stride + 1
    patches = []
    for kh in range(k):
        for kw in range(k):
            patches.append(
                xp[:, kh:kh + (Ho - 1) * stride + 1:stride,
                      kw:kw + (Wo - 1) * stride + 1:stride, :])
    cols = jnp.stack(patches, axis=3)                 # (N,Ho,Wo,k*k,C)
    cols = cols.reshape(N * Ho * Wo, k * k * C)
    return cols, N, Ho, Wo


# ----------------------------------------------------------------------------
# Parameter init (torch layout, deterministic) + one-time packing for the kernels
# ----------------------------------------------------------------------------
def init_params(key, nc, nfm, cnn_out, out_dim, img_size):
    exp = int(round(math.log(img_size) / math.log(2)))
    keys = iter(jax.random.split(key, 64))

    def conv_init(cin, cout, ksz):
        gain = math.sqrt(2.0)                         # calculate_gain('relu')
        fan_in, fan_out = cin * ksz * ksz, cout * ksz * ksz
        bound = gain * math.sqrt(6.0 / (fan_in + fan_out))
        w = jax.random.uniform(next(keys), (cout, cin, ksz, ksz),
                               jnp.float32, -bound, bound)
        return w, jnp.full((cout,), 0.1, jnp.float32)  # constant_(bias, 0.1)

    def linear_init(fin, fout):
        bound = 1.0 / math.sqrt(fin)
        w = jax.random.uniform(next(keys), (fin, fout), jnp.float32, -bound, bound)
        b = jax.random.uniform(next(keys), (fout,), jnp.float32, -bound, bound)
        return w, b

    params = {"conv0": conv_init(nc, nfm, 4)}
    mid = []
    for i in range(exp - 3):
        cout = nfm * 2 ** (i + 1)
        w, b = conv_init(nfm * 2 ** i, cout, 4)
        mid.append((w, b, jnp.ones((cout,), jnp.float32),
                    jnp.zeros((cout,), jnp.float32)))
    params["mid"] = mid
    params["conv_last"] = conv_init(nfm * 2 ** (exp - 3), cnn_out, 4)
    params["v1"] = linear_init(cnn_out, out_dim)
    params["v2"] = linear_init(out_dim, 1)
    params["fc"] = linear_init(cnn_out, out_dim)
    params["alpha"] = linear_init(out_dim, 3)
    params["beta"] = linear_init(out_dim, 3)
    return params


def pack_params(params):
    """One-time repack outside the hot path: bf16 (K,N) weight slabs, f32 (1,N) bias/BN."""
    def pack_conv(w_oihw, b):
        cout, cin, kh, kw = w_oihw.shape
        wp = jnp.transpose(w_oihw, (2, 3, 1, 0)).reshape(kh * kw * cin, cout)
        return wp.astype(jnp.bfloat16), b.reshape(1, -1).astype(jnp.float32)

    packed = {"conv0": pack_conv(*params["conv0"])}
    packed["mid"] = [
        pack_conv(w, b) + (g.reshape(1, -1).astype(jnp.float32),
                           be.reshape(1, -1).astype(jnp.float32))
        for (w, b, g, be) in params["mid"]
    ]
    packed["conv_last"] = pack_conv(*params["conv_last"])

    # Fused head weights.
    wv1, bv1 = params["v1"]
    wfc, bfc = params["fc"]
    wv2, bv2 = params["v2"]
    wa, ba = params["alpha"]
    wb, bb = params["beta"]
    out_dim = wv1.shape[1]
    w1 = jnp.concatenate([wv1, wfc], axis=1)                      # (cnn_out, 2*out_dim)
    b1 = jnp.concatenate([bv1, bfc]).reshape(1, -1)
    w2 = jnp.zeros((2 * out_dim, 7), jnp.float32)                 # block-diagonal
    w2 = w2.at[:out_dim, 0:1].set(wv2)
    w2 = w2.at[out_dim:, 1:4].set(wa)
    w2 = w2.at[out_dim:, 4:7].set(wb)
    b2 = jnp.concatenate([bv2, ba, bb]).reshape(1, -1)
    packed["head1"] = (w1.astype(jnp.bfloat16), b1.astype(jnp.float32))
    packed["head2"] = (w2.astype(jnp.bfloat16), b2.astype(jnp.float32))
    return packed


# ----------------------------------------------------------------------------
# Forward pass (Net.forward) -- takes the packed params
# ----------------------------------------------------------------------------
def net_forward(packed, x_nchw):
    x = jnp.transpose(x_nchw, (0, 2, 3, 1)).astype(jnp.bfloat16)  # NCHW -> NHWC, bf16
    # conv0 + ReLU (M-tiled GEMM)
    w, b = packed["conv0"]
    cols, N, Ho, Wo = im2col(x, 4, 2, 1)
    y = gemm(cols, w, b, act="relu")
    x = y.reshape(N, Ho, Wo, -1)
    # middle Conv + BatchNorm + ReLU blocks (fully fused, one launch each)
    for (w, b, gamma, beta) in packed["mid"]:
        cols, N, Ho, Wo = im2col(x, 4, 2, 1)
        y = conv_bn_relu_gemm(cols, w, b, gamma, beta)
        x = y.reshape(N, Ho, Wo, -1)
    # final conv (k=4, s=1, p=0 -> 1x1 spatial) + all heads in ONE kernel
    cols, N, Ho, Wo = im2col(x, 4, 1, 0)              # (B, k*k*Cin); Ho == Wo == 1
    wl, bl = packed["conv_last"]
    w1, b1 = packed["head1"]
    w2, b2 = packed["head2"]
    out = heads_fused(cols, wl, bl, w1, b1, w2, b2)   # (B, 7) = [v | alpha | beta]
    v = out[:, 0:1]
    alpha = out[:, 1:4]
    beta = out[:, 4:7]
    return (alpha, beta), v


# ----------------------------------------------------------------------------
# Pure-JAX f32 reference (numerical sanity check), uses torch-layout params
# ----------------------------------------------------------------------------
def net_reference(params, x_nchw):
    def conv(x, w, b, stride, pad):
        y = jax.lax.conv_general_dilated(
            x, w, (stride, stride), [(pad, pad), (pad, pad)],
            dimension_numbers=("NCHW", "OIHW", "NCHW"))
        return y + b[None, :, None, None]

    w, b = params["conv0"]
    x = jax.nn.relu(conv(x_nchw, w, b, 2, 1))
    for (w, b, gamma, beta) in params["mid"]:
        y = conv(x, w, b, 2, 1)
        mean = jnp.mean(y, axis=(0, 2, 3), keepdims=True)
        var = jnp.var(y, axis=(0, 2, 3), keepdims=True)
        y = (y - mean) * jax.lax.rsqrt(var + 1e-5) * gamma[None, :, None, None] \
            + beta[None, :, None, None]
        x = jax.nn.relu(y)
    w, b = params["conv_last"]
    feat = conv(x, w, b, 1, 0).reshape(x.shape[0], -1)
    xr = jax.nn.relu(feat)
    wv1, bv1 = params["v1"]
    wv2, bv2 = params["v2"]
    v = jax.nn.relu(xr @ wv1 + bv1) @ wv2 + bv2
    wfc, bfc = params["fc"]
    h = jax.nn.relu(xr @ wfc + bfc)
    wa, ba = params["alpha"]
    wb, bb = params["beta"]
    alpha = jax.nn.softplus(h @ wa + ba) + 1.0
    beta = jax.nn.softplus(h @ wb + bb) + 1.0
    return (alpha, beta), v


if __name__ == "__main__":
    # Small config consistent with Net(nc, nfm, cnn_out, out_dim, img_size)
    nc, nfm, cnn_out, out_dim, img_size, batch = 1, 8, 64, 32, 32, 2

    key = jax.random.PRNGKey(0)
    pkey, xkey = jax.random.split(key)
    params = init_params(pkey, nc, nfm, cnn_out, out_dim, img_size)
    packed = pack_params(params)                      # one-time weight repack
    x = jax.random.normal(xkey, (batch, nc, img_size, img_size), jnp.float32)

    fwd = jax.jit(net_forward)
    (alpha, beta), v = fwd(packed, x)
    jax.block_until_ready((alpha, beta, v))

    assert alpha.shape == (batch, 3) and beta.shape == (batch, 3)
    assert v.shape == (batch, 1)

    (a_ref, b_ref), v_ref = net_reference(params, x)
    # bf16 MXU operands (f32 accumulation) vs. pure-f32 reference -> 5e-2 tolerance.
    assert bool(jnp.allclose(alpha, a_ref, atol=5e-2, rtol=5e-2))
    assert bool(jnp.allclose(beta, b_ref, atol=5e-2, rtol=5e-2))
    assert bool(jnp.allclose(v, v_ref, atol=5e-2, rtol=5e-2))

    print("KERNEL_OK")
</pallas_src>

<mosaic_0001>
module attributes {stable_mosaic.version = 11 : i64} {
  func.func @_gemm_kernel(%arg0: i32, %arg1: memref<512x16xbf16, #tpu.memory_space<vmem>>, %arg2: memref<16x8xbf16, #tpu.memory_space<vmem>>, %arg3: memref<1x8xf32, #tpu.memory_space<vmem>>, %arg4: memref<512x8xbf16, #tpu.memory_space<vmem>>) attributes {dimension_semantics = [#tpu.dimension_semantics<parallel>], iteration_bounds = array<i64: 1>, scalar_prefetch = 0 : i64, scratch_operands = 0 : i64, tpu.core_type = #tpu.core_type<tc>, window_params = [{transform_indices = @transform_0, window_bounds = array<i64: 512, 16>}, {pipeline_mode = #tpu.pipeline_mode<synchronous>, transform_indices = @transform_1, window_bounds = array<i64: 16, 8>}, {pipeline_mode = #tpu.pipeline_mode<synchronous>, transform_indices = @transform_2, window_bounds = array<i64: 1, 8>}, {transform_indices = @transform_3, window_bounds = array<i64: 512, 8>}]} {
    %c0 = arith.constant 0 : index
    %c0_0 = arith.constant 0 : index
    %0 = vector.load %arg1[%c0, %c0_0] : memref<512x16xbf16, #tpu.memory_space<vmem>>, vector<512x16xbf16>
    %c0_1 = arith.constant 0 : index
    %c0_2 = arith.constant 0 : index
    %1 = vector.load %arg2[%c0_1, %c0_2] : memref<16x8xbf16, #tpu.memory_space<vmem>>, vector<16x8xbf16>
    %cst = arith.constant dense<0.000000e+00> : vector<512x8xf32>
    %2 = tpu.matmul %0, %1, %cst {dimension_numbers = #tpu.dot_dimension_numbers<[1], [0], [0], [1], [0, 0, 1, 1], [], []>} : vector<512x16xbf16>, vector<16x8xbf16>, vector<512x8xf32> -> vector<512x8xf32>
    %c0_3 = arith.constant 0 : index
    %c0_4 = arith.constant 0 : index
    %3 = vector.load %arg3[%c0_3, %c0_4] : memref<1x8xf32, #tpu.memory_space<vmem>>, vector<1x8xf32>
    %4 = vector.broadcast %3 : vector<1x8xf32> to vector<512x8xf32>
    %5 = arith.addf %2, %4 : vector<512x8xf32>
    %cst_5 = arith.constant 0.000000e+00 : f32
    %6 = vector.broadcast %cst_5 : f32 to vector<512x8xf32>
    %7 = arith.maximumf %5, %6 : vector<512x8xf32>
    %8 = arith.truncf %7 : vector<512x8xf32> to vector<512x8xbf16>
    %c0_6 = arith.constant 0 : index
    %c0_7 = arith.constant 0 : index
    %9 = vector.load %arg4[%c0_6, %c0_7] : memref<512x8xbf16, #tpu.memory_space<vmem>>, vector<512x8xbf16>
    tpu.vector_store %arg4[%c0_6, %c0_7], %8 {strides = array<i32>} : memref<512x8xbf16, #tpu.memory_space<vmem>>, vector<512x8xbf16>,
    return
  }
  func.func @transform_0(%arg0: i32) -> (i32, i32) {
    %c0_i32 = arith.constant 0 : i32
    %c0_i32_0 = arith.constant 0 : i32
    return %arg0, %c0_i32 : i32, i32
  }
  func.func @transform_1(%arg0: i32) -> (i32, i32) {
    %c0_i32 = arith.constant 0 : i32
    %c0_i32_0 = arith.constant 0 : i32
    %c0_i32_1 = arith.constant 0 : i32
    return %c0_i32, %c0_i32_0 : i32, i32
  }
  func.func @transform_2(%arg0: i32) -> (i32, i32) {
    %c0_i32 = arith.constant 0 : i32
    %c0_i32_0 = arith.constant 0 : i32
    %c0_i32_1 = arith.constant 0 : i32
    return %c0_i32, %c0_i32_0 : i32, i32
  }
  func.func @transform_3(%arg0: i32) -> (i32, i32) {
    %c0_i32 = arith.constant 0 : i32
    %c0_i32_0 = arith.constant 0 : i32
    return %arg0, %c0_i32 : i32, i32
  }
}

module attributes {stable_mosaic.version = 11 : i64} {
  func.func @_conv_bn_relu_kernel(%arg0: i32, %arg1: memref<128x128xbf16, #tpu.memory_space<vmem>>, %arg2: memref<128x16xbf16, #tpu.memory_space<vmem>>, %arg3: memref<1x16xf32, #tpu.memory_space<vmem>>, %arg4: memref<1x16xf32, #tpu.memory_space<vmem>>, %arg5: memref<1x16xf32, #tpu.memory_space<vmem>>, %arg6: memref<128x16xbf16, #tpu.memory_space<vmem>>) attributes {dimension_semantics = [#tpu.dimension_semantics<arbitrary>], iteration_bounds = array<i64: 1>, scalar_prefetch = 0 : i64, scratch_operands = 0 : i64, tpu.core_type = #tpu.core_type<tc>, window_params = [{pipeline_mode = #tpu.pipeline_mode<synchronous>, transform_indices = @transform_0, window_bounds = array<i64: 128, 128>}, {pipeline_mode = #tpu.pipeline_mode<synchronous>, transform_indices = @transform_1, window_bounds = array<i64: 128, 16>}, {pipeline_mode = #tpu.pipeline_mode<synchronous>, transform_indices = @transform_2, window_bounds = array<i64: 1, 16>}, {pipeline_mode = #tpu.pipeline_mode<synchronous>, transform_indices = @transform_3, window_bounds = array<i64: 1, 16>}, {pipeline_mode = #tpu.pipeline_mode<synchronous>, transform_indices = @transform_4, window_bounds = array<i64: 1, 16>}, {pipeline_mode = #tpu.pipeline_mode<synchronous>, transform_indices = @transform_5, window_bounds = array<i64: 128, 16>}]} {
    %c0 = arith.constant 0 : index
    %c0_0 = arith.constant 0 : index
    %0 = vector.load %arg1[%c0, %c0_0] : memref<128x128xbf16, #tpu.memory_space<vmem>>, vector<128x128xbf16>
    %c0_1 = arith.constant 0 : index
    %c0_2 = arith.constant 0 : index
    %1 = vector.load %arg2[%c0_1, %c0_2] : memref<128x16xbf16, #tpu.memory_space<vmem>>, vector<128x16xbf16>
    %cst = arith.constant dense<0.000000e+00> : vector<128x16xf32>
    %2 = tpu.matmul %0, %1, %cst {dimension_numbers = #tpu.dot_dimension_numbers<[1], [0], [0], [1], [0, 0, 1, 1], [], []>} : vector<128x128xbf16>, vector<128x16xbf16>, vector<128x16xf32> -> vector<128x16xf32>
    %c0_3 = arith.constant 0 : index
    %c0_4 = arith.constant 0 : index
    %3 = vector.load %arg3[%c0_3, %c0_4] : memref<1x16xf32, #tpu.memory_space<vmem>>, vector<1x16xf32>
    %4 = vector.broadcast %3 : vector<1x16xf32> to vector<128x16xf32>
    %5 = arith.addf %2, %4 : vector<128x16xf32>
    %cst_5 = arith.constant dense<0.000000e+00> : vector<16xf32>
    %6 = vector.multi_reduction <add>, %5, %cst_5 [0] : vector<128x16xf32> to vector<16xf32>
    %7 = vector.shape_cast %6 : vector<16xf32> to vector<1x16xf32>
    %cst_6 = arith.constant 1.280000e+02 : f32
    %8 = vector.broadcast %cst_6 : f32 to vector<1x16xf32>
    %9 = arith.divf %7, %8 : vector<1x16xf32>
    %10 = vector.broadcast %9 : vector<1x16xf32> to vector<128x16xf32>
    %11 = arith.subf %5, %10 : vector<128x16xf32>
    %12 = arith.mulf %11, %11 : vector<128x16xf32>
    %cst_7 = arith.constant dense<0.000000e+00> : vector<16xf32>
    %13 = vector.multi_reduction <add>, %12, %cst_7 [0] : vector<128x16xf32> to vector<16xf32>
    %14 = vector.shape_cast %13 : vector<16xf32> to vector<1x16xf32>
    %cst_8 = arith.constant 1.280000e+02 : f32
    %15 = vector.broadcast %cst_8 : f32 to vector<1x16xf32>
    %16 = arith.divf %14, %15 : vector<1x16xf32>
    %c0_9 = arith.constant 0 : index
    %c0_10 = arith.constant 0 : index
    %17 = vector.load %arg4[%c0_9, %c0_10] : memref<1x16xf32, #tpu.memory_space<vmem>>, vector<1x16xf32>
    %cst_11 = arith.constant 9.99999974E-6 : f32
    %18 = vector.broadcast %cst_11 : f32 to vector<1x16xf32>
    %19 = arith.addf %16, %18 : vector<1x16xf32>
    %20 = math.rsqrt %19 : vector<1x16xf32>
    %21 = arith.mulf %17, %20 : vector<1x16xf32>
    %22 = vector.broadcast %9 : vector<1x16xf32> to vector<128x16xf32>
    %23 = arith.subf %5, %22 : vector<128x16xf32>
    %24 = vector.broadcast %21 : vector<1x16xf32> to vector<128x16xf32>
    %25 = arith.mulf %23, %24 : vector<128x16xf32>
    %c0_12 = arith.constant 0 : index
    %c0_13 = arith.constant 0 : index
    %26 = vector.load %arg5[%c0_12, %c0_13] : memref<1x16xf32, #tpu.memory_space<vmem>>, vector<1x16xf32>
    %27 = vector.broadcast %26 : vector<1x16xf32> to vector<128x16xf32>
    %28 = arith.addf %25, %27 : vector<128x16xf32>
    %cst_14 = arith.constant 0.000000e+00 : f32
    %29 = vector.broadcast %cst_14 : f32 to vector<128x16xf32>
    %30 = arith.maximumf %28, %29 : vector<128x16xf32>
    %31 = arith.truncf %30 : vector<128x16xf32> to vector<128x16xbf16>
    %c0_15 = arith.constant 0 : index
    %c0_16 = arith.constant 0 : index
    %32 = vector.load %arg6[%c0_15, %c0_16] : memref<128x16xbf16, #tpu.memory_space<vmem>>, vector<128x16xbf16>
    tpu.vector_store %arg6[%c0_15, %c0_16], %31 {strides = array<i32>} : memref<128x16xbf16, #tpu.memory_space<vmem>>, vector<128x16xbf16>,
    return
  }
  func.func @transform_0(%arg0: i32) -> (i32, i32) {
    %c0_i32 = arith.constant 0 : i32
    %c0_i32_0 = arith.constant 0 : i32
    %c0_i32_1 = arith.constant 0 : i32
    return %c0_i32, %c0_i32_0 : i32, i32
  }
  func.func @transform_1(%arg0: i32) -> (i32, i32) {
    %c0_i32 = arith.constant 0 : i32
    %c0_i32_0 = arith.constant 0 : i32
    %c0_i32_1 = arith.constant 0 : i32
    return %c0_i32, %c0_i32_0 : i32, i32
  }
  func.func @transform_2(%arg0: i32) -> (i32, i32) {
    %c0_i32 = arith.constant 0 : i32
    %c0_i32_0 = arith.constant 0 : i32
    %c0_i32_1 = arith.constant 0 : i32
    return %c0_i32, %c0_i32_0 : i32, i32
  }
  func.func @transform_3(%arg0: i32) -> (i32, i32) {
    %c0_i32 = arith.constant 0 : i32
    %c0_i32_0 = arith.constant 0 : i32
    %c0_i32_1 = arith.constant 0 : i32
    return %c0_i32, %c0_i32_0 : i32, i32
  }
  func.func @transform_4(%arg0: i32) -> (i32, i32) {
    %c0_i32 = arith.constant 0 : i32
    %c0_i32_0 = arith.constant 0 : i32
    %c0_i32_1 = arith.constant 0 : i32
    return %c0_i32, %c0_i32_0 : i32, i32
  }
  func.func @transform_5(%arg0: i32) -> (i32, i32) {
    %c0_i32 = arith.constant 0 : i32
    %c0_i32_0 = arith.constant 0 : i32
    %c0_i32_1 = arith.constant 0 : i32
    return %c0_i32, %c0_i32_0 : i32, i32
  }
}

module attributes {stable_mosaic.version = 11 : i64} {
  func.func @_conv_bn_relu_kernel(%arg0: i32, %arg1: memref<32x256xbf16, #tpu.memory_space<vmem>>, %arg2: memref<256x32xbf16, #tpu.memory_space<vmem>>, %arg3: memref<1x32xf32, #tpu.memory_space<vmem>>, %arg4: memref<1x32xf32, #tpu.memory_space<vmem>>, %arg5: memref<1x32xf32, #tpu.memory_space<vmem>>, %arg6: memref<32x32xbf16, #tpu.memory_space<vmem>>) attributes {dimension_semantics = [#tpu.dimension_semantics<arbitrary>], iteration_bounds = array<i64: 1>, scalar_prefetch = 0 : i64, scratch_operands = 0 : i64, tpu.core_type = #tpu.core_type<tc>, window_params = [{pipeline_mode = #tpu.pipeline_mode<synchronous>, transform_indices = @transform_0, window_bounds = array<i64: 32, 256>}, {pipeline_mode = #tpu.pipeline_mode<synchronous>, transform_indices = @transform_1, window_bounds = array<i64: 256, 32>}, {pipeline_mode = #tpu.pipeline_mode<synchronous>, transform_indices = @transform_2, window_bounds = array<i64: 1, 32>}, {pipeline_mode = #tpu.pipeline_mode<synchronous>, transform_indices = @transform_3, window_bounds = array<i64: 1, 32>}, {pipeline_mode = #tpu.pipeline_mode<synchronous>, transform_indices = @transform_4, window_bounds = array<i64: 1, 32>}, {pipeline_mode = #tpu.pipeline_mode<synchronous>, transform_indices = @transform_5, window_bounds = array<i64: 32, 32>}]} {
    %c0 = arith.constant 0 : index
    %c0_0 = arith.constant 0 : index
    %0 = vector.load %arg1[%c0, %c0_0] : memref<32x256xbf16, #tpu.memory_space<vmem>>, vector<32x256xbf16>
    %c0_1 = arith.constant 0 : index
    %c0_2 = arith.constant 0 : index
    %1 = vector.load %arg2[%c0_1, %c0_2] : memref<256x32xbf16, #tpu.memory_space<vmem>>, vector<256x32xbf16>
    %cst = arith.constant dense<0.000000e+00> : vector<32x32xf32>
    %2 = tpu.matmul %0, %1, %cst {dimension_numbers = #tpu.dot_dimension_numbers<[1], [0], [0], [1], [0, 0, 1, 1], [], []>} : vector<32x256xbf16>, vector<256x32xbf16>, vector<32x32xf32> -> vector<32x32xf32>
    %c0_3 = arith.constant 0 : index
    %c0_4 = arith.constant 0 : index
    %3 = vector.load %arg3[%c0_3, %c0_4] : memref<1x32xf32, #tpu.memory_space<vmem>>, vector<1x32xf32>
    %4 = vector.broadcast %3 : vector<1x32xf32> to vector<32x32xf32>
    %5 = arith.addf %2, %4 : vector<32x32xf32>
    %cst_5 = arith.constant dense<0.000000e+00> : vector<32xf32>
    %6 = vector.multi_reduction <add>, %5, %cst_5 [0] : vector<32x32xf32> to vector<32xf32>
    %7 = vector.shape_cast %6 : vector<32xf32> to vector<1x32xf32>
    %cst_6 = arith.constant 3.200000e+01 : f32
    %8 = vector.broadcast %cst_6 : f32 to vector<1x32xf32>
    %9 = arith.divf %7, %8 : vector<1x32xf32>
    %10 = vector.broadcast %9 : vector<1x32xf32> to vector<32x32xf32>
    %11 = arith.subf %5, %10 : vector<32x32xf32>
    %12 = arith.mulf %11, %11 : vector<32x32xf32>
    %cst_7 = arith.constant dense<0.000000e+00> : vector<32xf32>
    %13 = vector.multi_reduction <add>, %12, %cst_7 [0] : vector<32x32xf32> to vector<32xf32>
    %14 = vector.shape_cast %13 : vector<32xf32> to vector<1x32xf32>
    %cst_8 = arith.constant 3.200000e+01 : f32
    %15 = vector.broadcast %cst_8 : f32 to vector<1x32xf32>
    %16 = arith.divf %14, %15 : vector<1x32xf32>
    %c0_9 = arith.constant 0 : index
    %c0_10 = arith.constant 0 : index
    %17 = vector.load %arg4[%c0_9, %c0_10] : memref<1x32xf32, #tpu.memory_space<vmem>>, vector<1x32xf32>
    %cst_11 = arith.constant 9.99999974E-6 : f32
    %18 = vector.broadcast %cst_11 : f32 to vector<1x32xf32>
    %19 = arith.addf %16, %18 : vector<1x32xf32>
    %20 = math.rsqrt %19 : vector<1x32xf32>
    %21 = arith.mulf %17, %20 : vector<1x32xf32>
    %22 = vector.broadcast %9 : vector<1x32xf32> to vector<32x32xf32>
    %23 = arith.subf %5, %22 : vector<32x32xf32>
    %24 = vector.broadcast %21 : vector<1x32xf32> to vector<32x32xf32>
    %25 = arith.mulf %23, %24 : vector<32x32xf32>
    %c0_12 = arith.constant 0 : index
    %c0_13 = arith.constant 0 : index
    %26 = vector.load %arg5[%c0_12, %c0_13] : memref<1x32xf32, #tpu.memory_space<vmem>>, vector<1x32xf32>
    %27 = vector.broadcast %26 : vector<1x32xf32> to vector<32x32xf32>
    %28 = arith.addf %25, %27 : vector<32x32xf32>
    %cst_14 = arith.constant 0.000000e+00 : f32
    %29 = vector.broadcast %cst_14 : f32 to vector<32x32xf32>
    %30 = arith.maximumf %28, %29 : vector<32x32xf32>
    %31 = arith.truncf %30 : vector<32x32xf32> to vector<32x32xbf16>
    %c0_15 = arith.constant 0 : index
    %c0_16 = arith.constant 0 : index
    %32 = vector.load %arg6[%c0_15, %c0_16] : memref<32x32xbf16, #tpu.memory_space<vmem>>, vector<32x32xbf16>
    tpu.vector_store %arg6[%c0_15, %c0_16], %31 {strides = array<i32>} : memref<32x32xbf16, #tpu.memory_space<vmem>>, vector<32x32xbf16>,
    return
  }
  func.func @transform_0(%arg0: i32) -> (i32, i32) {
    %c0_i32 = arith.constant 0 : i32
    %c0_i32_0 = arith.constant 0 : i32
    %c0_i32_1 = arith.constant 0 : i32
    return %c0_i32, %c0_i32_0 : i32, i32
  }
  func.func @transform_1(%arg0: i32) -> (i32, i32) {
    %c0_i32 = arith.constant 0 : i32
    %c0_i32_0 = arith.constant 0 : i32
    %c0_i32_1 = arith.constant 0 : i32
    return %c0_i32, %c0_i32_0 : i32, i32
  }
  func.func @transform_2(%arg0: i32) -> (i32, i32) {
    %c0_i32 = arith.constant 0 : i32
    %c0_i32_0 = arith.constant 0 : i32
    %c0_i32_1 = arith.constant 0 : i32
    return %c0_i32, %c0_i32_0 : i32, i32
  }
  func.func @transform_3(%arg0: i32) -> (i32, i32) {
    %c0_i32 = arith.constant 0 : i32
    %c0_i32_0 = arith.constant 0 : i32
    %c0_i32_1 = arith.constant 0 : i32
    return %c0_i32, %c0_i32_0 : i32, i32
  }
  func.func @transform_4(%arg0: i32) -> (i32, i32) {
    %c0_i32 = arith.constant 0 : i32
    %c0_i32_0 = arith.constant 0 : i32
    %c0_i32_1 = arith.constant 0 : i32
    return %c0_i32, %c0_i32_0 : i32, i32
  }
  func.func @transform_5(%arg0: i32) -> (i32, i32) {
    %c0_i32 = arith.constant 0 : i32
    %c0_i32_0 = arith.constant 0 : i32
    %c0_i32_1 = arith.constant 0 : i32
    return %c0_i32, %c0_i32_0 : i32, i32
  }
}

module attributes {stable_mosaic.version = 11 : i64} {
  func.func @_heads_kernel(%arg0: i32, %arg1: memref<2x512xbf16, #tpu.memory_space<vmem>>, %arg2: memref<512x64xbf16, #tpu.memory_space<vmem>>, %arg3: memref<1x64xf32, #tpu.memory_space<vmem>>, %arg4: memref<64x64xbf16, #tpu.memory_space<vmem>>, %arg5: memref<1x64xf32, #tpu.memory_space<vmem>>, %arg6: memref<64x7xbf16, #tpu.memory_space<vmem>>, %arg7: memref<1x7xf32, #tpu.memory_space<vmem>>, %arg8: memref<2x7xf32, #tpu.memory_space<vmem>>) attributes {dimension_semantics = [#tpu.dimension_semantics<arbitrary>], iteration_bounds = array<i64: 1>, scalar_prefetch = 0 : i64, scratch_operands = 0 : i64, tpu.core_type = #tpu.core_type<tc>, window_params = [{pipeline_mode = #tpu.pipeline_mode<synchronous>, transform_indices = @transform_0, window_bounds = array<i64: 2, 512>}, {pipeline_mode = #tpu.pipeline_mode<synchronous>, transform_indices = @transform_1, window_bounds = array<i64: 512, 64>}, {pipeline_mode = #tpu.pipeline_mode<synchronous>, transform_indices = @transform_2, window_bounds = array<i64: 1, 64>}, {pipeline_mode = #tpu.pipeline_mode<synchronous>, transform_indices = @transform_3, window_bounds = array<i64: 64, 64>}, {pipeline_mode = #tpu.pipeline_mode<synchronous>, transform_indices = @transform_4, window_bounds = array<i64: 1, 64>}, {pipeline_mode = #tpu.pipeline_mode<synchronous>, transform_indices = @transform_5, window_bounds = array<i64: 64, 7>}, {pipeline_mode = #tpu.pipeline_mode<synchronous>, transform_indices = @transform_6, window_bounds = array<i64: 1, 7>}, {pipeline_mode = #tpu.pipeline_mode<synchronous>, transform_indices = @transform_7, window_bounds = array<i64: 2, 7>}]} {
    %c0 = arith.constant 0 : index
    %c0_0 = arith.constant 0 : index
    %0 = vector.load %arg1[%c0, %c0_0] : memref<2x512xbf16, #tpu.memory_space<vmem>>, vector<2x512xbf16>
    %c0_1 = arith.constant 0 : index
    %c0_2 = arith.constant 0 : index
    %1 = vector.load %arg2[%c0_1, %c0_2] : memref<512x64xbf16, #tpu.memory_space<vmem>>, vector<512x64xbf16>
    %cst = arith.constant dense<0.000000e+00> : vector<2x64xf32>
    %2 = tpu.matmul %0, %1, %cst {dimension_numbers = #tpu.dot_dimension_numbers<[1], [0], [0], [1], [0, 0, 1, 1], [], []>} : vector<2x512xbf16>, vector<512x64xbf16>, vector<2x64xf32> -> vector<2x64xf32>
    %c0_3 = arith.constant 0 : index
    %c0_4 = arith.constant 0 : index
    %3 = vector.load %arg3[%c0_3, %c0_4] : memref<1x64xf32, #tpu.memory_space<vmem>>, vector<1x64xf32>
    %4 = vector.broadcast %3 : vector<1x64xf32> to vector<2x64xf32>
    %5 = arith.addf %2, %4 : vector<2x64xf32>
    %cst_5 = arith.constant 0.000000e+00 : f32
    %6 = vector.broadcast %cst_5 : f32 to vector<2x64xf32>
    %7 = arith.maximumf %5, %6 : vector<2x64xf32>
    %8 = arith.truncf %7 : vector<2x64xf32> to vector<2x64xbf16>
    %c0_6 = arith.constant 0 : index
    %c0_7 = arith.constant 0 : index
    %9 = vector.load %arg4[%c0_6, %c0_7] : memref<64x64xbf16, #tpu.memory_space<vmem>>, vector<64x64xbf16>
    %cst_8 = arith.constant dense<0.000000e+00> : vector<2x64xf32>
    %10 = tpu.matmul %8, %9, %cst_8 {dimension_numbers = #tpu.dot_dimension_numbers<[1], [0], [0], [1], [0, 0, 1, 1], [], []>} : vector<2x64xbf16>, vector<64x64xbf16>, vector<2x64xf32> -> vector<2x64xf32>
    %c0_9 = arith.constant 0 : index
    %c0_10 = arith.constant 0 : index
    %11 = vector.load %arg5[%c0_9, %c0_10] : memref<1x64xf32, #tpu.memory_space<vmem>>, vector<1x64xf32>
    %12 = vector.broadcast %11 : vector<1x64xf32> to vector<2x64xf32>
    %13 = arith.addf %10, %12 : vector<2x64xf32>
    %cst_11 = arith.constant 0.000000e+00 : f32
    %14 = vector.broadcast %cst_11 : f32 to vector<2x64xf32>
    %15 = arith.maximumf %13, %14 : vector<2x64xf32>
    %16 = arith.truncf %15 : vector<2x64xf32> to vector<2x64xbf16>
    %c0_12 = arith.constant 0 : index
    %c0_13 = arith.constant 0 : index
    %17 = vector.load %arg6[%c0_12, %c0_13] : memref<64x7xbf16, #tpu.memory_space<vmem>>, vector<64x7xbf16>
    %cst_14 = arith.constant dense<0.000000e+00> : vector<2x7xf32>
    %18 = tpu.matmul %16, %17, %cst_14 {dimension_numbers = #tpu.dot_dimension_numbers<[1], [0], [0], [1], [0, 0, 1, 1], [], []>} : vector<2x64xbf16>, vector<64x7xbf16>, vector<2x7xf32> -> vector<2x7xf32>
    %c0_15 = arith.constant 0 : index
    %c0_16 = arith.constant 0 : index
    %19 = vector.load %arg7[%c0_15, %c0_16] : memref<1x7xf32, #tpu.memory_space<vmem>>, vector<1x7xf32>
    %20 = vector.broadcast %19 : vector<1x7xf32> to vector<2x7xf32>
    %21 = arith.addf %18, %20 : vector<2x7xf32>
    %cst_17 = arith.constant 0.000000e+00 : f32
    %22 = vector.broadcast %cst_17 : f32 to vector<2x7xf32>
    %23 = arith.maximumf %21, %22 : vector<2x7xf32>
    %24 = math.absf %21 : vector<2x7xf32>
    %cst_18 = arith.constant 0.000000e+00 : f32
    %25 = vector.broadcast %cst_18 : f32 to vector<2x7xf32>
    %26 = arith.subf %25, %24 : vector<2x7xf32>
    %27 = math.exp %26 : vector<2x7xf32>
    %cst_19 = arith.constant 1.000000e+00 : f32
    %28 = vector.broadcast %cst_19 : f32 to vector<2x7xf32>
    %29 = arith.addf %28, %27 : vector<2x7xf32>
    %30 = math.log %29 : vector<2x7xf32>
    %31 = arith.addf %23, %30 : vector<2x7xf32>
    %cst_20 = arith.constant 1.000000e+00 : f32
    %32 = vector.broadcast %cst_20 : f32 to vector<2x7xf32>
    %33 = arith.addf %31, %32 : vector<2x7xf32>
    %34 = tpu.iota {dimensions = array<i32: 1>} : vector<2x7xi32>
    %c0_i32 = arith.constant 0 : i32
    %35 = vector.broadcast %c0_i32 : i32 to vector<2x7xi32>
    %36 = arith.cmpi eq, %34, %35 : vector<2x7xi32>
    %37 = arith.select %36, %21, %33 : vector<2x7xi1>, vector<2x7xf32>
    %c0_21 = arith.constant 0 : index
    %c0_22 = arith.constant 0 : index
    %38 = vector.load %arg8[%c0_21, %c0_22] : memref<2x7xf32, #tpu.memory_space<vmem>>, vector<2x7xf32>
    tpu.vector_store %arg8[%c0_21, %c0_22], %37 {strides = array<i32>} : memref<2x7xf32, #tpu.memory_space<vmem>>, vector<2x7xf32>,
    return
  }
  func.func @transform_0(%arg0: i32) -> (i32, i32) {
    %c0_i32 = arith.constant 0 : i32
    %c0_i32_0 = arith.constant 0 : i32
    %c0_i32_1 = arith.constant 0 : i32
    return %c0_i32, %c0_i32_0 : i32, i32
  }
  func.func @transform_1(%arg0: i32) -> (i32, i32) {
    %c0_i32 = arith.constant 0 : i32
    %c0_i32_0 = arith.constant 0 : i32
    %c0_i32_1 = arith.constant 0 : i32
    return %c0_i32, %c0_i32_0 : i32, i32
  }
  func.func @transform_2(%arg0: i32) -> (i32, i32) {
    %c0_i32 = arith.constant 0 : i32
    %c0_i32_0 = arith.constant 0 : i32
    %c0_i32_1 = arith.constant 0 : i32
    return %c0_i32, %c0_i32_0 : i32, i32
  }
  func.func @transform_3(%arg0: i32) -> (i32, i32) {
    %c0_i32 = arith.constant 0 : i32
    %c0_i32_0 = arith.constant 0 : i32
    %c0_i32_1 = arith.constant 0 : i32
    return %c0_i32, %c0_i32_0 : i32, i32
  }
  func.func @transform_4(%arg0: i32) -> (i32, i32) {
    %c0_i32 = arith.constant 0 : i32
    %c0_i32_0 = arith.constant 0 : i32
    %c0_i32_1 = arith.constant 0 : i32
    return %c0_i32, %c0_i32_0 : i32, i32
  }
  func.func @transform_5(%arg0: i32) -> (i32, i32) {
    %c0_i32 = arith.constant 0 : i32
    %c0_i32_0 = arith.constant 0 : i32
    %c0_i32_1 = arith.constant 0 : i32
    return %c0_i32, %c0_i32_0 : i32, i32
  }
  func.func @transform_6(%arg0: i32) -> (i32, i32) {
    %c0_i32 = arith.constant 0 : i32
    %c0_i32_0 = arith.constant 0 : i32
    %c0_i32_1 = arith.constant 0 : i32
    return %c0_i32, %c0_i32_0 : i32, i32
  }
  func.func @transform_7(%arg0: i32) -> (i32, i32) {
    %c0_i32 = arith.constant 0 : i32
    %c0_i32_0 = arith.constant 0 : i32
    %c0_i32_1 = arith.constant 0 : i32
    return %c0_i32, %c0_i32_0 : i32, i32
  }
}

</mosaic_0001>

<llo_original>
// kernel: net_forward.4
$region0: #{net_forward.4}
  #allocation0 [shape = 'u32[]', space=smem, size = 0x4, offset = 0x4, fixed_abs, tag = 'smem constant byte address 0x4 - core index']
  #allocation1 [shape = 'u32[144,128]{1,0:T(1,128)}', space=vmem, size = 0x12000, scoped, tag = 'internal scratch']
  %s0 = inlined_call_operand.vmem [shape: bf16[512,16], index: 0, kind: input, shape index: {}]
  %s1 = inlined_call_operand.vmem [shape: bf16[16,8], index: 1, kind: input, shape index: {}]
  %s2 = inlined_call_operand.vmem [shape: f32[1,8], index: 2, kind: input, shape index: {}]
  %s3 = inlined_call_operand.vmem [shape: bf16[512,8], index: 3, kind: output, shape index: {}]
  %s4 = sld [smem:[#allocation0]]
  $region22: #{net_forward.4} parent=0
    _
  %s6 = ssub.s32 1, %s4
  %s7 = scalar_select 0, %s6, %s4
  // Predicated region
  $region2: #{net_forward.4} parent=0 // pred_check
    _
  $region3: #{net_forward.4} parent=0 // pred_check_branch
    %9 = sbr.rel (0) target = $region5
  $region4: #{net_forward.4} parent=0 // pred_region
    _
  $region5: #{net_forward.4} parent=0 // pred_fallthru
    _
  // Predicated region
  $region6: #{net_forward.4} parent=0 // pred_check
    _
  $region7: #{net_forward.4} parent=0 // pred_check_branch
    %11 = sbr.rel (0) target = $region9
  $region8: #{net_forward.4} parent=0 // pred_region
    _
  $region9: #{net_forward.4} parent=0 // pred_fallthru
    _
  // Predicated region
  $region10: #{net_forward.4} parent=0 // pred_check
    _
  $region11: #{net_forward.4} parent=0 // pred_check_branch
    %13 = sbr.rel (0) target = $region13
  $region12: #{net_forward.4} parent=0 // pred_region
    _
  $region13: #{net_forward.4} parent=0 // pred_fallthru
    _
  %v15 = vld [vmem:[%s0] sm:$0xf]
  %v16 = vld [vmem:[%s0 + $0x4] sm:$0xf]
  %v17 = vld [vmem:[%s0 + $0x8] sm:$0xf]
  %v18 = vld [vmem:[%s0 + $0xc] sm:$0xf]
  %v19 = vld [vmem:[%s0 + $0x10] sm:$0xf]
  %v20 = vld [vmem:[%s0 + $0x14] sm:$0xf]
  %v21 = vld [vmem:[%s0 + $0x18] sm:$0xf]
  %v22 = vld [vmem:[%s0 + $0x1c] sm:$0xf]
  %v23 = vld [vmem:[%s0 + $0x20] sm:$0xf]
  %v24 = vld [vmem:[%s0 + $0x24] sm:$0xf]
  %v25 = vld [vmem:[%s0 + $0x28] sm:$0xf]
  %v26 = vld [vmem:[%s0 + $0x2c] sm:$0xf]
  %v27 = vld [vmem:[%s0 + $0x30] sm:$0xf]
  %v28 = vld [vmem:[%s0 + $0x34] sm:$0xf]
  %v29 = vld [vmem:[%s0 + $0x38] sm:$0xf]
  %v30 = vld [vmem:[%s0 + $0x3c] sm:$0xf]
  %v31 = vld [vmem:[%s0 + $0x40] sm:$0xf]
  %v32 = vld [vmem:[%s0 + $0x44] sm:$0xf]
  %v33 = vld [vmem:[%s0 + $0x48] sm:$0xf]
  %v34 = vld [vmem:[%s0 + $0x4c] sm:$0xf]
  %v35 = vld [vmem:[%s0 + $0x50] sm:$0xf]
  %v36 = vld [vmem:[%s0 + $0x54] sm:$0xf]
  %v37 = vld [vmem:[%s0 + $0x58] sm:$0xf]
  %v38 = vld [vmem:[%s0 + $0x5c] sm:$0xf]
  %v39 = vld [vmem:[%s0 + $0x60] sm:$0xf]
  %v40 = vld [vmem:[%s0 + $0x64] sm:$0xf]
  %v41 = vld [vmem:[%s0 + $0x68] sm:$0xf]
  %v42 = vld [vmem:[%s0 + $0x6c] sm:$0xf]
  %v43 = vld [vmem:[%s0 + $0x70] sm:$0xf]
  %v44 = vld [vmem:[%s0 + $0x74] sm:$0xf]
  %v45 = vld [vmem:[%s0 + $0x78] sm:$0xf]
  %v46 = vld [vmem:[%s0 + $0x7c] sm:$0xf]
  %v47 = vld [vmem:[%s0 + $0x80] sm:$0xf]
  %v48 = vld [vmem:[%s0 + $0x84] sm:$0xf]
  %v49 = vld [vmem:[%s0 + $0x88] sm:$0xf]
  %v50 = vld [vmem:[%s0 + $0x8c] sm:$0xf]
  %v51 = vld [vmem:[%s0 + $0x90] sm:$0xf]
  %v52 = vld [vmem:[%s0 + $0x94] sm:$0xf]
  %v53 = vld [vmem:[%s0 + $0x98] sm:$0xf]
  %v54 = vld [vmem:[%s0 + $0x9c] sm:$0xf]
  %v55 = vld [vmem:[%s0 + $0xa0] sm:$0xf]
  %v56 = vld [vmem:[%s0 + $0xa4] sm:$0xf]
  %v57 = vld [vmem:[%s0 + $0xa8] sm:$0xf]
  %v58 = vld [vmem:[%s0 + $0xac] sm:$0xf]
  %v59 = vld [vmem:[%s0 + $0xb0] sm:$0xf]
  %v60 = vld [vmem:[%s0 + $0xb4] sm:$0xf]
  %v61 = vld [vmem:[%s0 + $0xb8] sm:$0xf]
  %v62 = vld [vmem:[%s0 + $0xbc] sm:$0xf]
  %v63 = vld [vmem:[%s0 + $0xc0] sm:$0xf]
  %v64 = vld [vmem:[%s0 + $0xc4] sm:$0xf]
  %v65 = vld [vmem:[%s0 + $0xc8] sm:$0xf]
  %v66 = vld [vmem:[%s0 + $0xcc] sm:$0xf]
  %v67 = vld [vmem:[%s0 + $0xd0] sm:$0xf]
  %v68 = vld [vmem:[%s0 + $0xd4] sm:$0xf]
  %v69 = vld [vmem:[%s0 + $0xd8] sm:$0xf]
  %v70 = vld [vmem:[%s0 + $0xdc] sm:$0xf]
  %v71 = vld [vmem:[%s0 + $0xe0] sm:$0xf]
  %v72 = vld [vmem:[%s0 + $0xe4] sm:$0xf]
  %v73 = vld [vmem:[%s0 + $0xe8] sm:$0xf]
  %v74 = vld [vmem:[%s0 + $0xec] sm:$0xf]
  %v75 = vld [vmem:[%s0 + $0xf0] sm:$0xf]
  %v76 = vld [vmem:[%s0 + $0xf4] sm:$0xf]
  %v77 = vld [vmem:[%s0 + $0xf8] sm:$0xf]
  %v78 = vld [vmem:[%s0 + $0xfc] sm:$0xf]
  %v79 = vld [vmem:[%s1] sm:$0xf]
  %v80 = vld [vmem:[%s1 + $0x4] sm:$0xf]
  %v81 = vld [vmem:[%s2] sm:$0x1]
  %v83 = vlaneseq
  %v84 = vshrl.u32 %v83, 7
  %v85 = vsub.s32 0, %v84
  %v86 = vrot.slane %v81, %v85
  %v152 = vunpack.c.l.b16 %v15
  %v153 = vunpack.c.l.b16 %v16
  %v154 = vunpack.c.l.b16 %v17
  %v155 = vunpack.c.l.b16 %v18
  %v156 = vunpack.c.l.b16 %v19
  %v157 = vunpack.c.l.b16 %v20
  %v158 = vunpack.c.l.b16 %v21
  %v159 = vunpack.c.l.b16 %v22
  %v160 = vunpack.c.l.b16 %v23
  %v161 = vunpack.c.l.b16 %v24
  %v162 = vunpack.c.l.b16 %v25
  %v163 = vunpack.c.l.b16 %v26
  %v164 = vunpack.c.l.b16 %v27
  %v165 = vunpack.c.l.b16 %v28
  %v166 = vunpack.c.l.b16 %v29
  %v167 = vunpack.c.l.b16 %v30
  %v168 = vunpack.c.l.b16 %v31
  %v169 = vunpack.c.l.b16 %v32
  %v170 = vunpack.c.l.b16 %v33
  %v171 = vunpack.c.l.b16 %v34
  %v172 = vunpack.c.l.b16 %v35
  %v173 = vunpack.c.l.b16 %v36
  %v174 = vunpack.c.l.b16 %v37
  %v175 = vunpack.c.l.b16 %v38
  %v176 = vunpack.c.l.b16 %v39
  %v177 = vunpack.c.l.b16 %v40
  %v178 = vunpack.c.l.b16 %v41
  %v179 = vunpack.c.l.b16 %v42
  %v180 = vunpack.c.l.b16 %v43
  %v181 = vunpack.c.l.b16 %v44
  %v182 = vunpack.c.l.b16 %v45
  %v183 = vunpack.c.l.b16 %v46
  %v184 = vunpack.c.l.b16 %v47
  %v185 = vunpack.c.l.b16 %v48
  %v186 = vunpack.c.l.b16 %v49
  %v187 = vunpack.c.l.b16 %v50
  %v188 = vunpack.c.l.b16 %v51
  %v189 = vunpack.c.l.b16 %v52
  %v190 = vunpack.c.l.b16 %v53
  %v191 = vunpack.c.l.b16 %v54
  %v192 = vunpack.c.l.b16 %v55
  %v193 = vunpack.c.l.b16 %v56
  %v194 = vunpack.c.l.b16 %v57
  %v195 = vunpack.c.l.b16 %v58
  %v196 = vunpack.c.l.b16 %v59
  %v197 = vunpack.c.l.b16 %v60
  %v198 = vunpack.c.l.b16 %v61
  %v199 = vunpack.c.l.b16 %v62
  %v200 = vunpack.c.l.b16 %v63
  %v201 = vunpack.c.l.b16 %v64
  %v202 = vunpack.c.l.b16 %v65
  %v203 = vunpack.c.l.b16 %v66
  %v204 = vunpack.c.l.b16 %v67
  %v205 = vunpack.c.l.b16 %v68
  %v206 = vunpack.c.l.b16 %v69
  %v207 = vunpack.c.l.b16 %v70
  %v208 = vunpack.c.l.b16 %v71
  %v209 = vunpack.c.l.b16 %v72
  %v210 = vunpack.c.l.b16 %v73
  %v211 = vunpack.c.l.b16 %v74
  %v212 = vunpack.c.l.b16 %v75
  %v213 = vunpack.c.l.b16 %v76
  %v214 = vunpack.c.l.b16 %v77
  %v215 = vunpack.c.l.b16 %v78
  %v216 = vpack.c.b16 %v153, %v152
  %v217 = vpack.c.b16 %v155, %v154
  %v218 = vpack.c.b16 %v157, %v156
  %v219 = vpack.c.b16 %v159, %v158
  %v220 = vpack.c.b16 %v161, %v160
  %v221 = vpack.c.b16 %v163, %v162
  %v222 = vpack.c.b16 %v165, %v164
  %v223 = vpack.c.b16 %v167, %v166
  %v224 = vpack.c.b16 %v169, %v168
  %v225 = vpack.c.b16 %v171, %v170
  %v226 = vpack.c.b16 %v173, %v172
  %v227 = vpack.c.b16 %v175, %v174
  %v228 = vpack.c.b16 %v177, %v176
  %v229 = vpack.c.b16 %v179, %v178
  %v230 = vpack.c.b16 %v181, %v180
  %v231 = vpack.c.b16 %v183, %v182
  %v232 = vpack.c.b16 %v185, %v184
  %v233 = vpack.c.b16 %v187, %v186
  %v234 = vpack.c.b16 %v189, %v188
  %v235 = vpack.c.b16 %v191, %v190
  %v236 = vpack.c.b16 %v193, %v192
  %v237 = vpack.c.b16 %v195, %v194
  %v238 = vpack.c.b16 %v197, %v196
  %v239 = vpack.c.b16 %v199, %v198
  %v240 = vpack.c.b16 %v201, %v200
  %v241 = vpack.c.b16 %v203, %v202
  %v242 = vpack.c.b16 %v205, %v204
  %v243 = vpack.c.b16 %v207, %v206
  %v244 = vpack.c.b16 %v209, %v208
  %v245 = vpack.c.b16 %v211, %v210
  %v246 = vpack.c.b16 %v213, %v212
  %v247 = vpack.c.b16 %v215, %v214
  %v250 = vunpack.c.l.b16 %v79
  %v251 = vunpack.c.l.b16 %v80
  %v252 = vpack.c.b16 %v251, %v250
  %vm254 = vcmask 130048
  %v256 = vsel %vm254, %v216, 0
  %v259 = vsel %vm254, %v217, 0
  %v262 = vsel %vm254, %v218, 0
  %v265 = vsel %vm254, %v219, 0
  %v268 = vsel %vm254, %v220, 0
  %v271 = vsel %vm254, %v221, 0
  %v274 = vsel %vm254, %v222, 0
  %v277 = vsel %vm254, %v223, 0
  %v280 = vsel %vm254, %v224, 0
  %v283 = vsel %vm254, %v225, 0
  %v286 = vsel %vm254, %v226, 0
  %v289 = vsel %vm254, %v227, 0
  %v292 = vsel %vm254, %v228, 0
  %v295 = vsel %vm254, %v229, 0
  %v298 = vsel %vm254, %v230, 0
  %v301 = vsel %vm254, %v231, 0
  %v304 = vsel %vm254, %v232, 0
  %v307 = vsel %vm254, %v233, 0
  %v310 = vsel %vm254, %v234, 0
  %v313 = vsel %vm254, %v235, 0
  %v316 = vsel %vm254, %v236, 0
  %v319 = vsel %vm254, %v237, 0
  %v322 = vsel %vm254, %v238, 0
  %v325 = vsel %vm254, %v239, 0
  %v328 = vsel %vm254, %v240, 0
  %v331 = vsel %vm254, %v241, 0
  %v334 = vsel %vm254, %v242, 0
  %v337 = vsel %vm254, %v243, 0
  %v340 = vsel %vm254, %v244, 0
  %v343 = vsel %vm254, %v245, 0
  %v346 = vsel %vm254, %v246, 0
  %v349 = vsel %vm254, %v247, 0
  %351 = vmatprep.subr.bf16.mxu0 0
  %352 = vmatpush1.bf16.msra.mxu0 %v252
  %353 = vmatprep.subr.bf16.mxu0 0
  %354 = vmatpush1.bf16.msra.mxu0 0
  %355 = vmatprep.subr.bf16.mxu0 0
  %356 = vmatpush1.bf16.msra.mxu0 0
  %357 = vmatprep.subr.bf16.mxu0 0
  %358 = vmatpush1.bf16.msra.mxu0 0
  %359 = vmatprep.subr.bf16.mxu0 0
  %360 = vmatpush1.bf16.msra.mxu0 0
  %361 = vmatprep.subr.bf16.mxu0 0
  %362 = vmatpush1.bf16.msra.mxu0 0
  %363 = vmatprep.subr.bf16.mxu0 0
  %364 = vmatpush1.bf16.msra.mxu0 0
  %365 = vmatprep.subr.bf16.mxu0 0
  %366 = vmatpush1.bf16.msra.mxu0 0
  %367 = vmatprep.subr.bf16.mxu0 0
  %368 = vmatpush1.bf16.msra.mxu0 0
  %369 = vmatprep.subr.bf16.mxu0 0
  %370 = vmatpush1.bf16.msra.mxu0 0
  %371 = vmatprep.subr.bf16.mxu0 0
  %372 = vmatpush1.bf16.msra.mxu0 0
  %373 = vmatprep.subr.bf16.mxu0 0
  %374 = vmatpush1.bf16.msra.mxu0 0
  %375 = vmatprep.subr.bf16.mxu0 0
  %376 = vmatpush1.bf16.msra.mxu0 0
  %377 = vmatprep.subr.bf16.mxu0 0
  %378 = vmatpush1.bf16.msra.mxu0 0
  %379 = vmatprep.subr.bf16.mxu0 0
  %380 = vmatpush1.bf16.msra.mxu0 0
  %381 = vmatprep.subr.bf16.mxu0 0
  %382 = vmatpush1.bf16.msra.mxu0 0
  %383 = vmatprep.mubr.bf16.mxu0 0
  %384 = vmatmul.mubr.bf16.gmra.mrb[0].mxu0 %v256
  %v385 = vpop.f32.mrb[0].mxu0
  %v386 = vadd.f32 %v86, %v385
  %v387 = vpop.f32.mrb[0].mxu0
  %v388 = vpop.f32.mrb[0].mxu0
  %v389 = vadd.f32 %v86, %v388
  %v390 = vpop.f32.mrb[0].mxu0
  %391 = vmatprep.mubr.bf16.mxu0 0
  %392 = vmatmul.mubr.bf16.gmra.mrb[0].mxu0 %v259
  %v393 = vpop.f32.mrb[0].mxu0
  %v394 = vadd.f32 %v86, %v393
  %v395 = vpop.f32.mrb[0].mxu0
  %v396 = vpop.f32.mrb[0].mxu0
  %v397 = vadd.f32 %v86, %v396
  %v398 = vpop.f32.mrb[0].mxu0
  %399 = vmatprep.mubr.bf16.mxu0 0
  %400 = vmatmul.mubr.bf16.gmra.mrb[0].mxu0 %v262
  %v401 = vpop.f32.mrb[0].mxu0
  %v402 = vadd.f32 %v86, %v401
  %v403 = vpop.f32.mrb[0].mxu0
  %v404 = vpop.f32.mrb[0].mxu0
  %v405 = vadd.f32 %v86, %v404
  %v406 = vpop.f32.mrb[0].mxu0
  %407 = vmatprep.mubr.bf16.mxu0 0
  %408 = vmatmul.mubr.bf16.gmra.mrb[0].mxu0 %v265
  %v409 = vpop.f32.mrb[0].mxu0
  %v410 = vadd.f32 %v86, %v409
  %v411 = vpop.f32.mrb[0].mxu0
  %v412 = vpop.f32.mrb[0].mxu0
  %v413 = vadd.f32 %v86, %v412
  %v414 = vpop.f32.mrb[0].mxu0
  %415 = vmatprep.mubr.bf16.mxu0 0
  %416 = vmatmul.mubr.bf16.gmra.mrb[0].mxu0 %v268
  %v417 = vpop.f32.mrb[0].mxu0
  %v418 = vadd.f32 %v86, %v417
  %v419 = vpop.f32.mrb[0].mxu0
  %v420 = vpop.f32.mrb[0].mxu0
  %v421 = vadd.f32 %v86, %v420
  %v422 = vpop.f32.mrb[0].mxu0
  %423 = vmatprep.mubr.bf16.mxu0 0
  %424 = vmatmul.mubr.bf16.gmra.mrb[0].mxu0 %v271
  %v425 = vpop.f32.mrb[0].mxu0
  %v426 = vadd.f32 %v86, %v425
  %v427 = vpop.f32.mrb[0].mxu0
  %v428 = vpop.f32.mrb[0].mxu0
  %v429 = vadd.f32 %v86, %v428
  %v430 = vpop.f32.mrb[0].mxu0
  %431 = vmatprep.mubr.bf16.mxu0 0
  %432 = vmatmul.mubr.bf16.gmra.mrb[0].mxu0 %v274
  %v433 = vpop.f32.mrb[0].mxu0
  %v434 = vadd.f32 %v86, %v433
  %v435 = vpop.f32.mrb[0].mxu0
  %v436 = vpop.f32.mrb[0].mxu0
  %v437 = vadd.f32 %v86, %v436
  %v438 = vpop.f32.mrb[0].mxu0
  %439 = vmatprep.mubr.bf16.mxu0 0
  %440 = vmatmul.mubr.bf16.gmra.mrb[0].mxu0 %v277
  %v441 = vpop.f32.mrb[0].mxu0
  %v442 = vadd.f32 %v86, %v441
  %v443 = vpop.f32.mrb[0].mxu0
  %v444 = vpop.f32.mrb[0].mxu0
  %v445 = vadd.f32 %v86, %v444
  %v446 = vpop.f32.mrb[0].mxu0
  %447 = vmatprep.mubr.bf16.mxu0 0
  %448 = vmatmul.mubr.bf16.gmra.mrb[0].mxu0 %v280
  %v449 = vpop.f32.mrb[0].mxu0
  %v450 = vadd.f32 %v86, %v449
  %v451 = vpop.f32.mrb[0].mxu0
  %v452 = vpop.f32.mrb[0].mxu0
  %v453 = vadd.f32 %v86, %v452
  %v454 = vpop.f32.mrb[0].mxu0
  %455 = vmatprep.mubr.bf16.mxu0 0
  %456 = vmatmul.mubr.bf16.gmra.mrb[0].mxu0 %v283
  %v457 = vpop.f32.mrb[0].mxu0
  %v458 = vadd.f32 %v86, %v457
  %v459 = vpop.f32.mrb[0].mxu0
  %v460 = vpop.f32.mrb[0].mxu0
  %v461 = vadd.f32 %v86, %v460
  %v462 = vpop.f32.mrb[0].mxu0
  %463 = vmatprep.mubr.bf16.mxu0 0
  %464 = vmatmul.mubr.bf16.gmra.mrb[0].mxu0 %v286
  %v465 = vpop.f32.mrb[0].mxu0
  %v466 = vadd.f32 %v86, %v465
  %v467 = vpop.f32.mrb[0].mxu0
  %v468 = vpop.f32.mrb[0].mxu0
  %v469 = vadd.f32 %v86, %v468
  %v470 = vpop.f32.mrb[0].mxu0
  %471 = vmatprep.mubr.bf16.mxu0 0
  %472 = vmatmul.mubr.bf16.gmra.mrb[0].mxu0 %v289
  %v473 = vpop.f32.mrb[0].mxu0
  %v474 = vadd.f32 %v86, %v473
  %v475 = vpop.f32.mrb[0].mxu0
  %v476 = vpop.f32.mrb[0].mxu0
  %v477 = vadd.f32 %v86, %v476
  %v478 = vpop.f32.mrb[0].mxu0
  %479 = vmatprep.mubr.bf16.mxu0 0
  %480 = vmatmul.mubr.bf16.gmra.mrb[0].mxu0 %v292
  %v481 = vpop.f32.mrb[0].mxu0
  %v482 = vadd.f32 %v86, %v481
  %v483 = vpop.f32.mrb[0].mxu0
  %v484 = vpop.f32.mrb[0].mxu0
  %v485 = vadd.f32 %v86, %v484
  %v486 = vpop.f32.mrb[0].mxu0
  %487 = vmatprep.mubr.bf16.mxu0 0
  %488 = vmatmul.mubr.bf16.gmra.mrb[0].mxu0 %v295
  %v489 = vpop.f32.mrb[0].mxu0
  %v490 = vadd.f32 %v86, %v489
  %v491 = vpop.f32.mrb[0].mxu0
  %v492 = vpop.f32.mrb[0].mxu0
  %v493 = vadd.f32 %v86, %v492
  %v494 = vpop.f32.mrb[0].mxu0
  %495 = vmatprep.mubr.bf16.mxu0 0
  %496 = vmatmul.mubr.bf16.gmra.mrb[0].mxu0 %v298
  %v497 = vpop.f32.mrb[0].mxu0
  %v498 = vadd.f32 %v86, %v497
  %v499 = vpop.f32.mrb[0].mxu0
  %v500 = vpop.f32.mrb[0].mxu0
  %v501 = vadd.f32 %v86, %v500
  %v502 = vpop.f32.mrb[0].mxu0
  %503 = vmatprep.mubr.bf16.mxu0 0
  %504 = vmatmul.mubr.bf16.gmra.mrb[0].mxu0 %v301
  %v505 = vpop.f32.mrb[0].mxu0
  %v506 = vadd.f32 %v86, %v505
  %v507 = vpop.f32.mrb[0].mxu0
  %v508 = vpop.f32.mrb[0].mxu0
  %v509 = vadd.f32 %v86, %v508
  %v510 = vpop.f32.mrb[0].mxu0
  %511 = vmatprep.mubr.bf16.mxu0 0
  %512 = vmatmul.mubr.bf16.gmra.mrb[0].mxu0 %v304
  %v513 = vpop.f32.mrb[0].mxu0
  %v514 = vadd.f32 %v86, %v513
  %v515 = vpop.f32.mrb[0].mxu0
  %v516 = vpop.f32.mrb[0].mxu0
  %v517 = vadd.f32 %v86, %v516
  %v518 = vpop.f32.mrb[0].mxu0
  %519 = vmatprep.mubr.bf16.mxu0 0
  %520 = vmatmul.mubr.bf16.gmra.mrb[0].mxu0 %v307
  %v521 = vpop.f32.mrb[0].mxu0
  %v522 = vadd.f32 %v86, %v521
  %v523 = vpop.f32.mrb[0].mxu0
  %v524 = vpop.f32.mrb[0].mxu0
  %v525 = vadd.f32 %v86, %v524
  %v526 = vpop.f32.mrb[0].mxu0
  %527 = vmatprep.mubr.bf16.mxu0 0
  %528 = vmatmul.mubr.bf16.gmra.mrb[0].mxu0 %v310
  %v529 = vpop.f32.mrb[0].mxu0
  %v530 = vadd.f32 %v86, %v529
  %v531 = vpop.f32.mrb[0].mxu0
  %v532 = vpop.f32.mrb[0].mxu0
  %v533 = vadd.f32 %v86, %v532
  %v534 = vpop.f32.mrb[0].mxu0
  %535 = vmatprep.mubr.bf16.mxu0 0
  %536 = vmatmul.mubr.bf16.gmra.mrb[0].mxu0 %v313
  %v537 = vpop.f32.mrb[0].mxu0
  %v538 = vadd.f32 %v86, %v537
  %v539 = vpop.f32.mrb[0].mxu0
  %v540 = vpop.f32.mrb[0].mxu0
  %v541 = vadd.f32 %v86, %v540
  %v542 = vpop.f32.mrb[0].mxu0
  %543 = vmatprep.mubr.bf16.mxu0 0
  %544 = vmatmul.mubr.bf16.gmra.mrb[0].mxu0 %v316
  %v545 = vpop.f32.mrb[0].mxu0
  %v546 = vadd.f32 %v86, %v545
  %v547 = vpop.f32.mrb[0].mxu0
  %v548 = vpop.f32.mrb[0].mxu0
  %v549 = vadd.f32 %v86, %v548
  %v550 = vpop.f32.mrb[0].mxu0
  %551 = vmatprep.mubr.bf16.mxu0 0
  %552 = vmatmul.mubr.bf16.gmra.mrb[0].mxu0 %v319
  %v553 = vpop.f32.mrb[0].mxu0
  %v554 = vadd.f32 %v86, %v553
  %v555 = vpop.f32.mrb[0].mxu0
  %v556 = vpop.f32.mrb[0].mxu0
  %v557 = vadd.f32 %v86, %v556
  %v558 = vpop.f32.mrb[0].mxu0
  %559 = vmatprep.mubr.bf16.mxu0 0
  %560 = vmatmul.mubr.bf16.gmra.mrb[0].mxu0 %v322
  %v561 = vpop.f32.mrb[0].mxu0
  %v562 = vadd.f32 %v86, %v561
  %v563 = vpop.f32.mrb[0].mxu0
  %v564 = vpop.f32.mrb[0].mxu0
  %v565 = vadd.f32 %v86, %v564
  %v566 = vpop.f32.mrb[0].mxu0
  %567 = vmatprep.mubr.bf16.mxu0 0
  %568 = vmatmul.mubr.bf16.gmra.mrb[0].mxu0 %v325
  %v569 = vpop.f32.mrb[0].mxu0
  %v570 = vadd.f32 %v86, %v569
  %v571 = vpop.f32.mrb[0].mxu0
  %v572 = vpop.f32.mrb[0].mxu0
  %v573 = vadd.f32 %v86, %v572
  %v574 = vpop.f32.mrb[0].mxu0
  %575 = vmatprep.mubr.bf16.mxu0 0
  %576 = vmatmul.mubr.bf16.gmra.mrb[0].mxu0 %v328
  %v577 = vpop.f32.mrb[0].mxu0
  %v578 = vadd.f32 %v86, %v577
  %v579 = vpop.f32.mrb[0].mxu0
  %v580 = vpop.f32.mrb[0].mxu0
  %v581 = vadd.f32 %v86, %v580
  %v582 = vpop.f32.mrb[0].mxu0
  %583 = vmatprep.mubr.bf16.mxu0 0
  %584 = vmatmul.mubr.bf16.gmra.mrb[0].mxu0 %v331
  %v585 = vpop.f32.mrb[0].mxu0
  %v586 = vadd.f32 %v86, %v585
  %v587 = vpop.f32.mrb[0].mxu0
  %v588 = vpop.f32.mrb[0].mxu0
  %v589 = vadd.f32 %v86, %v588
  %v590 = vpop.f32.mrb[0].mxu0
  %591 = vmatprep.mubr.bf16.mxu0 0
  %592 = vmatmul.mubr.bf16.gmra.mrb[0].mxu0 %v334
  %v593 = vpop.f32.mrb[0].mxu0
  %v594 = vadd.f32 %v86, %v593
  %v595 = vpop.f32.mrb[0].mxu0
  %v596 = vpop.f32.mrb[0].mxu0
  %v597 = vadd.f32 %v86, %v596
  %v598 = vpop.f32.mrb[0].mxu0
  %599 = vmatprep.mubr.bf16.mxu0 0
  %600 = vmatmul.mubr.bf16.gmra.mrb[0].mxu0 %v337
  %v601 = vpop.f32.mrb[0].mxu0
  %v602 = vadd.f32 %v86, %v601
  %v603 = vpop.f32.mrb[0].mxu0
  %v604 = vpop.f32.mrb[0].mxu0
  %v605 = vadd.f32 %v86, %v604
  %v606 = vpop.f32.mrb[0].mxu0
  %607 = vmatprep.mubr.bf16.mxu0 0
  %608 = vmatmul.mubr.bf16.gmra.mrb[0].mxu0 %v340
  %v609 = vpop.f32.mrb[0].mxu0
  %v610 = vadd.f32 %v86, %v609
  %v611 = vpop.f32.mrb[0].mxu0
  %v612 = vpop.f32.mrb[0].mxu0
  %v613 = vadd.f32 %v86, %v612
  %v614 = vpop.f32.mrb[0].mxu0
  %615 = vmatprep.mubr.bf16.mxu0 0
  %616 = vmatmul.mubr.bf16.gmra.mrb[0].mxu0 %v343
  %v617 = vpop.f32.mrb[0].mxu0
  %v618 = vadd.f32 %v86, %v617
  %v619 = vpop.f32.mrb[0].mxu0
  %v620 = vpop.f32.mrb[0].mxu0
  %v621 = vadd.f32 %v86, %v620
  %v622 = vpop.f32.mrb[0].mxu0
  %623 = vmatprep.mubr.bf16.mxu0 0
  %624 = vmatmul.mubr.bf16.gmra.mrb[0].mxu0 %v346
  %v625 = vpop.f32.mrb[0].mxu0
  %v626 = vadd.f32 %v86, %v625
  %v627 = vpop.f32.mrb[0].mxu0
  %v628 = vpop.f32.mrb[0].mxu0
  %v629 = vadd.f32 %v86, %v628
  %v630 = vpop.f32.mrb[0].mxu0
  %631 = vmatprep.mubr.bf16.mxu0 0
  %632 = vmatmul.mubr.bf16.gmra.mrb[0].mxu0 %v349
  %v633 = vpop.f32.mrb[0].mxu0
  %v634 = vadd.f32 %v86, %v633
  %v635 = vpop.f32.mrb[0].mxu0
  %v636 = vpop.f32.mrb[0].mxu0
  %v637 = vadd.f32 %v86, %v636
  %v638 = vpop.f32.mrb[0].mxu0
  %639 = vdwg.mxu0
  %v640 = vmax.f32 %v386, 0.0
  %v641 = vmax.f32 %v389, 0.0
  %v642 = vmax.f32 %v394, 0.0
  %v643 = vmax.f32 %v397, 0.0
  %v644 = vmax.f32 %v402, 0.0
  %v645 = vmax.f32 %v405, 0.0
  %v646 = vmax.f32 %v410, 0.0
  %v647 = vmax.f32 %v413, 0.0
  %v648 = vmax.f32 %v418, 0.0
  %v649 = vmax.f32 %v421, 0.0
  %v650 = vmax.f32 %v426, 0.0
  %v651 = vmax.f32 %v429, 0.0
  %v652 = vmax.f32 %v434, 0.0
  %v653 = vmax.f32 %v437, 0.0
  %v654 = vmax.f32 %v442, 0.0
  %v655 = vmax.f32 %v445, 0.0
  %v656 = vmax.f32 %v450, 0.0
  %v657 = vmax.f32 %v453, 0.0
  %v658 = vmax.f32 %v458, 0.0
  %v659 = vmax.f32 %v461, 0.0
  %v660 = vmax.f32 %v466, 0.0
  %v661 = vmax.f32 %v469, 0.0
  %v662 = vmax.f32 %v474, 0.0
  %v663 = vmax.f32 %v477, 0.0
  %v664 = vmax.f32 %v482, 0.0
  %v665 = vmax.f32 %v485, 0.0
  %v666 = vmax.f32 %v490, 0.0
  %v667 = vmax.f32 %v493, 0.0
  %v668 = vmax.f32 %v498, 0.0
  %v669 = vmax.f32 %v501, 0.0
  %v670 = vmax.f32 %v506, 0.0
  %v671 = vmax.f32 %v509, 0.0
  %v672 = vmax.f32 %v514, 0.0
  %v673 = vmax.f32 %v517, 0.0
  %v674 = vmax.f32 %v522, 0.0
  %v675 = vmax.f32 %v525, 0.0
  %v676 = vmax.f32 %v530, 0.0
  %v677 = vmax.f32 %v533, 0.0
  %v678 = vmax.f32 %v538, 0.0
  %v679 = vmax.f32 %v541, 0.0
  %v680 = vmax.f32 %v546, 0.0
  %v681 = vmax.f32 %v549, 0.0
  %v682 = vmax.f32 %v554, 0.0
  %v683 = vmax.f32 %v557, 0.0
  %v684 = vmax.f32 %v562, 0.0
  %v685 = vmax.f32 %v565, 0.0
  %v686 = vmax.f32 %v570, 0.0
  %v687 = vmax.f32 %v573, 0.0
  %v688 = vmax.f32 %v578, 0.0
  %v689 = vmax.f32 %v581, 0.0
  %v690 = vmax.f32 %v586, 0.0
  %v691 = vmax.f32 %v589, 0.0
  %v692 = vmax.f32 %v594, 0.0
  %v693 = vmax.f32 %v597, 0.0
  %v694 = vmax.f32 %v602, 0.0
  %v695 = vmax.f32 %v605, 0.0
  %v696 = vmax.f32 %v610, 0.0
  %v697 = vmax.f32 %v613, 0.0
  %v698 = vmax.f32 %v618, 0.0
  %v699 = vmax.f32 %v621, 0.0
  %v700 = vmax.f32 %v626, 0.0
  %v701 = vmax.f32 %v629, 0.0
  %v702 = vmax.f32 %v634, 0.0
  %v703 = vmax.f32 %v637, 0.0
  %v704 = vpack.c.bf16 %v641, %v640
  %v705 = vpack.c.bf16 %v643, %v642
  %v706 = vpack.c.bf16 %v645, %v644
  %v707 = vpack.c.bf16 %v647, %v646
  %v708 = vpack.c.bf16 %v649, %v648
  %v709 = vpack.c.bf16 %v651, %v650
  %v710 = vpack.c.bf16 %v653, %v652
  %v711 = vpack.c.bf16 %v655, %v654
  %v712 = vpack.c.bf16 %v657, %v656
  %v713 = vpack.c.bf16 %v659, %v658
  %v714 = vpack.c.bf16 %v661, %v660
  %v715 = vpack.c.bf16 %v663, %v662
  %v716 = vpack.c.bf16 %v665, %v664
  %v717 = vpack.c.bf16 %v667, %v666
  %v718 = vpack.c.bf16 %v669, %v668
  %v719 = vpack.c.bf16 %v671, %v670
  %v720 = vpack.c.bf16 %v673, %v672
  %v721 = vpack.c.bf16 %v675, %v674
  %v722 = vpack.c.bf16 %v677, %v676
  %v723 = vpack.c.bf16 %v679, %v678
  %v724 = vpack.c.bf16 %v681, %v680
  %v725 = vpack.c.bf16 %v683, %v682
  %v726 = vpack.c.bf16 %v685, %v684
  %v727 = vpack.c.bf16 %v687, %v686
  %v728 = vpack.c.bf16 %v689, %v688
  %v729 = vpack.c.bf16 %v691, %v690
  %v730 = vpack.c.bf16 %v693, %v692
  %v731 = vpack.c.bf16 %v695, %v694
  %v732 = vpack.c.bf16 %v697, %v696
  %v733 = vpack.c.bf16 %v699, %v698
  %v734 = vpack.c.bf16 %v701, %v700
  %v735 = vpack.c.bf16 %v703, %v702
  %v768 = vunpack.c.l.b16 %v704
  %v769 = vunpack.c.h.b16 %v704
  %v770 = vunpack.c.l.b16 %v705
  %v771 = vunpack.c.h.b16 %v705
  %v772 = vunpack.c.l.b16 %v706
  %v773 = vunpack.c.h.b16 %v706
  %v774 = vunpack.c.l.b16 %v707
  %v775 = vunpack.c.h.b16 %v707
  %v776 = vunpack.c.l.b16 %v708
  %v777 = vunpack.c.h.b16 %v708
  %v778 = vunpack.c.l.b16 %v709
  %v779 = vunpack.c.h.b16 %v709
  %v780 = vunpack.c.l.b16 %v710
  %v781 = vunpack.c.h.b16 %v710
  %v782 = vunpack.c.l.b16 %v711
  %v783 = vunpack.c.h.b16 %v711
  %v784 = vunpack.c.l.b16 %v712
  %v785 = vunpack.c.h.b16 %v712
  %v786 = vunpack.c.l.b16 %v713
  %v787 = vunpack.c.h.b16 %v713
  %v788 = vunpack.c.l.b16 %v714
  %v789 = vunpack.c.h.b16 %v714
  %v790 = vunpack.c.l.b16 %v715
  %v791 = vunpack.c.h.b16 %v715
  %v792 = vunpack.c.l.b16 %v716
  %v793 = vunpack.c.h.b16 %v716
  %v794 = vunpack.c.l.b16 %v717
  %v795 = vunpack.c.h.b16 %v717
  %v796 = vunpack.c.l.b16 %v718
  %v797 = vunpack.c.h.b16 %v718
  %v798 = vunpack.c.l.b16 %v719
  %v799 = vunpack.c.h.b16 %v719
  %v800 = vunpack.c.l.b16 %v720
  %v801 = vunpack.c.h.b16 %v720
  %v802 = vunpack.c.l.b16 %v721
  %v803 = vunpack.c.h.b16 %v721
  %v804 = vunpack.c.l.b16 %v722
  %v805 = vunpack.c.h.b16 %v722
  %v806 = vunpack.c.l.b16 %v723
  %v807 = vunpack.c.h.b16 %v723
  %v808 = vunpack.c.l.b16 %v724
  %v809 = vunpack.c.h.b16 %v724
  %v810 = vunpack.c.l.b16 %v725
  %v811 = vunpack.c.h.b16 %v725
  %v812 = vunpack.c.l.b16 %v726
  %v813 = vunpack.c.h.b16 %v726
  %v814 = vunpack.c.l.b16 %v727
  %v815 = vunpack.c.h.b16 %v727
  %v816 = vunpack.c.l.b16 %v728
  %v817 = vunpack.c.h.b16 %v728
  %v818 = vunpack.c.l.b16 %v729
  %v819 = vunpack.c.h.b16 %v729
  %v820 = vunpack.c.l.b16 %v730
  %v821 = vunpack.c.h.b16 %v730
  %v822 = vunpack.c.l.b16 %v731
  %v823 = vunpack.c.h.b16 %v731
  %v824 = vunpack.c.l.b16 %v732
  %v825 = vunpack.c.h.b16 %v732
  %v826 = vunpack.c.l.b16 %v733
  %v827 = vunpack.c.h.b16 %v733
  %v828 = vunpack.c.l.b16 %v734
  %v829 = vunpack.c.h.b16 %v734
  %v830 = vunpack.c.l.b16 %v735
  %v831 = vunpack.c.h.b16 %v735
  %v832 = vpack.c.b16 %v768, %v768
  %v833 = vpack.c.b16 %v769, %v769
  %v834 = vpack.c.b16 %v770, %v770
  %v835 = vpack.c.b16 %v771, %v771
  %v836 = vpack.c.b16 %v772, %v772
  %v837 = vpack.c.b16 %v773, %v773
  %v838 = vpack.c.b16 %v774, %v774
  %v839 = vpack.c.b16 %v775, %v775
  %v840 = vpack.c.b16 %v776, %v776
  %v841 = vpack.c.b16 %v777, %v777
  %v842 = vpack.c.b16 %v778, %v778
  %v843 = vpack.c.b16 %v779, %v779
  %v844 = vpack.c.b16 %v780, %v780
  %v845 = vpack.c.b16 %v781, %v781
  %v846 = vpack.c.b16 %v782, %v782
  %v847 = vpack.c.b16 %v783, %v783
  %v848 = vpack.c.b16 %v784, %v784
  %v849 = vpack.c.b16 %v785, %v785
  %v850 = vpack.c.b16 %v786, %v786
  %v851 = vpack.c.b16 %v787, %v787
  %v852 = vpack.c.b16 %v788, %v788
  %v853 = vpack.c.b16 %v789, %v789
  %v854 = vpack.c.b16 %v790, %v790
  %v855 = vpack.c.b16 %v791, %v791
  %v856 = vpack.c.b16 %v792, %v792
  %v857 = vpack.c.b16 %v793, %v793
  %v858 = vpack.c.b16 %v794, %v794
  %v859 = vpack.c.b16 %v795, %v795
  %v860 = vpack.c.b16 %v796, %v796
  %v861 = vpack.c.b16 %v797, %v797
  %v862 = vpack.c.b16 %v798, %v798
  %v863 = vpack.c.b16 %v799, %v799
  %v864 = vpack.c.b16 %v800, %v800
  %v865 = vpack.c.b16 %v801, %v801
  %v866 = vpack.c.b16 %v802, %v802
  %v867 = vpack.c.b16 %v803, %v803
  %v868 = vpack.c.b16 %v804, %v804
  %v869 = vpack.c.b16 %v805, %v805
  %v870 = vpack.c.b16 %v806, %v806
  %v871 = vpack.c.b16 %v807, %v807
  %v872 = vpack.c.b16 %v808, %v808
  %v873 = vpack.c.b16 %v809, %v809
  %v874 = vpack.c.b16 %v810, %v810
  %v875 = vpack.c.b16 %v811, %v811
  %v876 = vpack.c.b16 %v812, %v812
  %v877 = vpack.c.b16 %v813, %v813
  %v878 = vpack.c.b16 %v814, %v814
  %v879 = vpack.c.b16 %v815, %v815
  %v880 = vpack.c.b16 %v816, %v816
  %v881 = vpack.c.b16 %v817, %v817
  %v882 = vpack.c.b16 %v818, %v818
  %v883 = vpack.c.b16 %v819, %v819
  %v884 = vpack.c.b16 %v820, %v820
  %v885 = vpack.c.b16 %v821, %v821
  %v886 = vpack.c.b16 %v822, %v822
  %v887 = vpack.c.b16 %v823, %v823
  %v888 = vpack.c.b16 %v824, %v824
  %v889 = vpack.c.b16 %v825, %v825
  %v890 = vpack.c.b16 %v826, %v826
  %v891 = vpack.c.b16 %v827, %v827
  %v892 = vpack.c.b16 %v828, %v828
  %v893 = vpack.c.b16 %v829, %v829
  %v894 = vpack.c.b16 %v830, %v830
  %v895 = vpack.c.b16 %v831, %v831
  %vm960 = vcmask 60416
  %961 = vst.msk [vmem:[%s3] sm:$0xf] %vm960, %v832
  %962 = vst.msk [vmem:[%s3 + $0x4] sm:$0xf] %vm960, %v833
  %963 = vst.msk [vmem:[%s3 + $0x8] sm:$0xf] %vm960, %v834
  %964 = vst.msk [vmem:[%s3 + $0xc] sm:$0xf] %vm960, %v835
  %965 = vst.msk [vmem:[%s3 + $0x10] sm:$0xf] %vm960, %v836
  %966 = vst.msk [vmem:[%s3 + $0x14] sm:$0xf] %vm960, %v837
  %967 = vst.msk [vmem:[%s3 + $0x18] sm:$0xf] %vm960, %v838
  %968 = vst.msk [vmem:[%s3 + $0x1c] sm:$0xf] %vm960, %v839
  %969 = vst.msk [vmem:[%s3 + $0x20] sm:$0xf] %vm960, %v840
  %970 = vst.msk [vmem:[%s3 + $0x24] sm:$0xf] %vm960, %v841
  %971 = vst.msk [vmem:[%s3 + $0x28] sm:$0xf] %vm960, %v842
  %972 = vst.msk [vmem:[%s3 + $0x2c] sm:$0xf] %vm960, %v843
  %973 = vst.msk [vmem:[%s3 + $0x30] sm:$0xf] %vm960, %v844
  %974 = vst.msk [vmem:[%s3 + $0x34] sm:$0xf] %vm960, %v845
  %975 = vst.msk [vmem:[%s3 + $0x38] sm:$0xf] %vm960, %v846
  %976 = vst.msk [vmem:[%s3 + $0x3c] sm:$0xf] %vm960, %v847
  %977 = vst.msk [vmem:[%s3 + $0x40] sm:$0xf] %vm960, %v848
  %978 = vst.msk [vmem:[%s3 + $0x44] sm:$0xf] %vm960, %v849
  %979 = vst.msk [vmem:[%s3 + $0x48] sm:$0xf] %vm960, %v850
  %980 = vst.msk [vmem:[%s3 + $0x4c] sm:$0xf] %vm960, %v851
  %981 = vst.msk [vmem:[%s3 + $0x50] sm:$0xf] %vm960, %v852
  %982 = vst.msk [vmem:[%s3 + $0x54] sm:$0xf] %vm960, %v853
  %983 = vst.msk [vmem:[%s3 + $0x58] sm:$0xf] %vm960, %v854
  %984 = vst.msk [vmem:[%s3 + $0x5c] sm:$0xf] %vm960, %v855
  %985 = vst.msk [vmem:[%s3 + $0x60] sm:$0xf] %vm960, %v856
  %986 = vst.msk [vmem:[%s3 + $0x64] sm:$0xf] %vm960, %v857
  %987 = vst.msk [vmem:[%s3 + $0x68] sm:$0xf] %vm960, %v858
  %988 = vst.msk [vmem:[%s3 + $0x6c] sm:$0xf] %vm960, %v859
  %989 = vst.msk [vmem:[%s3 + $0x70] sm:$0xf] %vm960, %v860
  %990 = vst.msk [vmem:[%s3 + $0x74] sm:$0xf] %vm960, %v861
  %991 = vst.msk [vmem:[%s3 + $0x78] sm:$0xf] %vm960, %v862
  %992 = vst.msk [vmem:[%s3 + $0x7c] sm:$0xf] %vm960, %v863
  %993 = vst.msk [vmem:[%s3 + $0x80] sm:$0xf] %vm960, %v864
  %994 = vst.msk [vmem:[%s3 + $0x84] sm:$0xf] %vm960, %v865
  %995 = vst.msk [vmem:[%s3 + $0x88] sm:$0xf] %vm960, %v866
  %996 = vst.msk [vmem:[%s3 + $0x8c] sm:$0xf] %vm960, %v867
  %997 = vst.msk [vmem:[%s3 + $0x90] sm:$0xf] %vm960, %v868
  %998 = vst.msk [vmem:[%s3 + $0x94] sm:$0xf] %vm960, %v869
  %999 = vst.msk [vmem:[%s3 + $0x98] sm:$0xf] %vm960, %v870
  %1000 = vst.msk [vmem:[%s3 + $0x9c] sm:$0xf] %vm960, %v871
  %1001 = vst.msk [vmem:[%s3 + $0xa0] sm:$0xf] %vm960, %v872
  %1002 = vst.msk [vmem:[%s3 + $0xa4] sm:$0xf] %vm960, %v873
  %1003 = vst.msk [vmem:[%s3 + $0xa8] sm:$0xf] %vm960, %v874
  %1004 = vst.msk [vmem:[%s3 + $0xac] sm:$0xf] %vm960, %v875
  %1005 = vst.msk [vmem:[%s3 + $0xb0] sm:$0xf] %vm960, %v876
  %1006 = vst.msk [vmem:[%s3 + $0xb4] sm:$0xf] %vm960, %v877
  %1007 = vst.msk [vmem:[%s3 + $0xb8] sm:$0xf] %vm960, %v878
  %1008 = vst.msk [vmem:[%s3 + $0xbc] sm:$0xf] %vm960, %v879
  %1009 = vst.msk [vmem:[%s3 + $0xc0] sm:$0xf] %vm960, %v880
  %1010 = vst.msk [vmem:[%s3 + $0xc4] sm:$0xf] %vm960, %v881
  %1011 = vst.msk [vmem:[%s3 + $0xc8] sm:$0xf] %vm960, %v882
  %1012 = vst.msk [vmem:[%s3 + $0xcc] sm:$0xf] %vm960, %v883
  %1013 = vst.msk [vmem:[%s3 + $0xd0] sm:$0xf] %vm960, %v884
  %1014 = vst.msk [vmem:[%s3 + $0xd4] sm:$0xf] %vm960, %v885
  %1015 = vst.msk [vmem:[%s3 + $0xd8] sm:$0xf] %vm960, %v886
  %1016 = vst.msk [vmem:[%s3 + $0xdc] sm:$0xf] %vm960, %v887
  %1017 = vst.msk [vmem:[%s3 + $0xe0] sm:$0xf] %vm960, %v888
  %1018 = vst.msk [vmem:[%s3 + $0xe4] sm:$0xf] %vm960, %v889
  %1019 = vst.msk [vmem:[%s3 + $0xe8] sm:$0xf] %vm960, %v890
  %1020 = vst.msk [vmem:[%s3 + $0xec] sm:$0xf] %vm960, %v891
  %1021 = vst.msk [vmem:[%s3 + $0xf0] sm:$0xf] %vm960, %v892
  %1022 = vst.msk [vmem:[%s3 + $0xf4] sm:$0xf] %vm960, %v893
  %1023 = vst.msk [vmem:[%s3 + $0xf8] sm:$0xf] %vm960, %v894
  %1024 = vst.msk [vmem:[%s3 + $0xfc] sm:$0xf] %vm960, %v895
  // Predicated region
  $region14: #{net_forward.4} parent=0 // pred_check
    _
  $region15: #{net_forward.4} parent=0 // pred_check_branch
    %1026 = sbr.rel (0) target = $region17
  $region16: #{net_forward.4} parent=0 // pred_region
    _
  $region17: #{net_forward.4} parent=0 // pred_fallthru
    _
  // Predicated region
  $region18: #{net_forward.4} parent=0 // pred_check
    _
  $region19: #{net_forward.4} parent=0 // pred_check_branch
    %1028 = sbr.rel (0) target = $region21
  $region20: #{net_forward.4} parent=0 // pred_region
    _
  $region21: #{net_forward.4} parent=0 // pred_fallthru
    _

// kernel: net_forward.5
$region0: #{net_forward.5}
  #allocation0 [shape = 'u32[]', space=smem, size = 0x4, offset = 0x4, fixed_abs, tag = 'smem constant byte address 0x4 - core index']
  #allocation1 [shape = 'u32[144,128]{1,0:T(1,128)}', space=vmem, size = 0x12000, scoped, tag = 'internal scratch']
  %s0 = inlined_call_operand.vmem [shape: bf16[128,128], index: 0, kind: input, shape index: {}]
  %s1 = inlined_call_operand.vmem [shape: bf16[128,16], index: 1, kind: input, shape index: {}]
  %s2 = inlined_call_operand.vmem [shape: f32[1,16], index: 2, kind: input, shape index: {}]
  %s3 = inlined_call_operand.vmem [shape: f32[1,16], index: 3, kind: input, shape index: {}]
  %s4 = inlined_call_operand.vmem [shape: f32[1,16], index: 4, kind: input, shape index: {}]
  %s5 = inlined_call_operand.vmem [shape: bf16[128,16], index: 5, kind: output, shape index: {}]
  %s6 = sld [smem:[#allocation0]]
  $region30: #{net_forward.5} parent=0
    _
  %s8 = ssub.s32 1, %s6
  %s9 = scalar_select 0, %s8, %s6
  // Predicated region
  $region2: #{net_forward.5} parent=0 // pred_check
    _
  $region3: #{net_forward.5} parent=0 // pred_check_branch
    %11 = sbr.rel (0) target = $region5
  $region4: #{net_forward.5} parent=0 // pred_region
    _
  $region5: #{net_forward.5} parent=0 // pred_fallthru
    _
  // Predicated region
  $region6: #{net_forward.5} parent=0 // pred_check
    _
  $region7: #{net_forward.5} parent=0 // pred_check_branch
    %13 = sbr.rel (0) target = $region9
  $region8: #{net_forward.5} parent=0 // pred_region
    _
  $region9: #{net_forward.5} parent=0 // pred_fallthru
    _
  // Predicated region
  $region10: #{net_forward.5} parent=0 // pred_check
    _
  $region11: #{net_forward.5} parent=0 // pred_check_branch
    %15 = sbr.rel (0) target = $region13
  $region12: #{net_forward.5} parent=0 // pred_region
    _
  $region13: #{net_forward.5} parent=0 // pred_fallthru
    _
  // Predicated region
  $region14: #{net_forward.5} parent=0 // pred_check
    _
  $region15: #{net_forward.5} parent=0 // pred_check_branch
    %17 = sbr.rel (0) target = $region17
  $region16: #{net_forward.5} parent=0 // pred_region
    _
  $region17: #{net_forward.5} parent=0 // pred_fallthru
    _
  // Predicated region
  $region18: #{net_forward.5} parent=0 // pred_check
    _
  $region19: #{net_forward.5} parent=0 // pred_check_branch
    %19 = sbr.rel (0) target = $region21
  $region20: #{net_forward.5} parent=0 // pred_region
    _
  $region21: #{net_forward.5} parent=0 // pred_fallthru
    _
  %v21 = vld [vmem:[%s0] sm:$0xf]
  %v22 = vld [vmem:[%s0 + $0x4] sm:$0xf]
  %v23 = vld [vmem:[%s0 + $0x8] sm:$0xf]
  %v24 = vld [vmem:[%s0 + $0xc] sm:$0xf]
  %v25 = vld [vmem:[%s0 + $0x10] sm:$0xf]
  %v26 = vld [vmem:[%s0 + $0x14] sm:$0xf]
  %v27 = vld [vmem:[%s0 + $0x18] sm:$0xf]
  %v28 = vld [vmem:[%s0 + $0x1c] sm:$0xf]
  %v29 = vld [vmem:[%s0 + $0x20] sm:$0xf]
  %v30 = vld [vmem:[%s0 + $0x24] sm:$0xf]
  %v31 = vld [vmem:[%s0 + $0x28] sm:$0xf]
  %v32 = vld [vmem:[%s0 + $0x2c] sm:$0xf]
  %v33 = vld [vmem:[%s0 + $0x30] sm:$0xf]
  %v34 = vld [vmem:[%s0 + $0x34] sm:$0xf]
  %v35 = vld [vmem:[%s0 + $0x38] sm:$0xf]
  %v36 = vld [vmem:[%s0 + $0x3c] sm:$0xf]
  %v37 = vld [vmem:[%s1] sm:$0xf]
  %v38 = vld [vmem:[%s1 + $0x4] sm:$0xf]
  %v39 = vld [vmem:[%s1 + $0x8] sm:$0xf]
  %v40 = vld [vmem:[%s1 + $0xc] sm:$0xf]
  %v41 = vld [vmem:[%s1 + $0x10] sm:$0xf]
  %v42 = vld [vmem:[%s1 + $0x14] sm:$0xf]
  %v43 = vld [vmem:[%s1 + $0x18] sm:$0xf]
  %v44 = vld [vmem:[%s1 + $0x1c] sm:$0xf]
  %v45 = vld [vmem:[%s1 + $0x20] sm:$0xf]
  %v46 = vld [vmem:[%s1 + $0x24] sm:$0xf]
  %v47 = vld [vmem:[%s1 + $0x28] sm:$0xf]
  %v48 = vld [vmem:[%s1 + $0x2c] sm:$0xf]
  %v49 = vld [vmem:[%s1 + $0x30] sm:$0xf]
  %v50 = vld [vmem:[%s1 + $0x34] sm:$0xf]
  %v51 = vld [vmem:[%s1 + $0x38] sm:$0xf]
  %v52 = vld [vmem:[%s1 + $0x3c] sm:$0xf]
  %v53 = vld [vmem:[%s2] sm:$0x1]
  %v55 = vlaneseq
  %v56 = vshrl.u32 %v55, 7
  %v57 = vsub.s32 0, %v56
  %v58 = vrot.slane %v53, %v57
  %v76 = vunpack.c.l.b16 %v21
  %v77 = vunpack.c.l.b16 %v22
  %v78 = vunpack.c.l.b16 %v23
  %v79 = vunpack.c.l.b16 %v24
  %v80 = vunpack.c.l.b16 %v25
  %v81 = vunpack.c.l.b16 %v26
  %v82 = vunpack.c.l.b16 %v27
  %v83 = vunpack.c.l.b16 %v28
  %v84 = vunpack.c.l.b16 %v29
  %v85 = vunpack.c.l.b16 %v30
  %v86 = vunpack.c.l.b16 %v31
  %v87 = vunpack.c.l.b16 %v32
  %v88 = vunpack.c.l.b16 %v33
  %v89 = vunpack.c.l.b16 %v34
  %v90 = vunpack.c.l.b16 %v35
  %v91 = vunpack.c.l.b16 %v36
  %v92 = vpack.c.b16 %v77, %v76
  %v93 = vpack.c.b16 %v79, %v78
  %v94 = vpack.c.b16 %v81, %v80
  %v95 = vpack.c.b16 %v83, %v82
  %v96 = vpack.c.b16 %v85, %v84
  %v97 = vpack.c.b16 %v87, %v86
  %v98 = vpack.c.b16 %v89, %v88
  %v99 = vpack.c.b16 %v91, %v90
  %v124 = vunpack.c.l.b16 %v37
  %v125 = vunpack.c.l.b16 %v38
  %v126 = vunpack.c.l.b16 %v39
  %v127 = vunpack.c.l.b16 %v40
  %v128 = vunpack.c.l.b16 %v41
  %v129 = vunpack.c.l.b16 %v42
  %v130 = vunpack.c.l.b16 %v43
  %v131 = vunpack.c.l.b16 %v44
  %v132 = vunpack.c.l.b16 %v45
  %v133 = vunpack.c.l.b16 %v46
  %v134 = vunpack.c.l.b16 %v47
  %v135 = vunpack.c.l.b16 %v48
  %v136 = vunpack.c.l.b16 %v49
  %v137 = vunpack.c.l.b16 %v50
  %v138 = vunpack.c.l.b16 %v51
  %v139 = vunpack.c.l.b16 %v52
  %v140 = vpack.c.b16 %v125, %v124
  %v141 = vpack.c.b16 %v127, %v126
  %v142 = vpack.c.b16 %v129, %v128
  %v143 = vpack.c.b16 %v131, %v130
  %v144 = vpack.c.b16 %v133, %v132
  %v145 = vpack.c.b16 %v135, %v134
  %v146 = vpack.c.b16 %v137, %v136
  %v147 = vpack.c.b16 %v139, %v138
  %156 = vmatprep.subr.bf16.mxu0 0
  %157 = vmatpush1.bf16.msra.mxu0 %v140
  %158 = vmatprep.subr.bf16.mxu0 0
  %159 = vmatpush1.bf16.msra.mxu0 %v141
  %160 = vmatprep.subr.bf16.mxu0 0
  %161 = vmatpush1.bf16.msra.mxu0 %v142
  %162 = vmatprep.subr.bf16.mxu0 0
  %163 = vmatpush1.bf16.msra.mxu0 %v143
  %164 = vmatprep.subr.bf16.mxu0 0
  %165 = vmatpush1.bf16.msra.mxu0 %v144
  %166 = vmatprep.subr.bf16.mxu0 0
  %167 = vmatpush1.bf16.msra.mxu0 %v145
  %168 = vmatprep.subr.bf16.mxu0 0
  %169 = vmatpush1.bf16.msra.mxu0 %v146
  %170 = vmatprep.subr.bf16.mxu0 0
  %171 = vmatpush1.bf16.msra.mxu0 %v147
  %172 = vmatprep.subr.bf16.mxu0 0
  %173 = vmatpush1.bf16.msra.mxu0 0
  %174 = vmatprep.subr.bf16.mxu0 0
  %175 = vmatpush1.bf16.msra.mxu0 0
  %176 = vmatprep.subr.bf16.mxu0 0
  %177 = vmatpush1.bf16.msra.mxu0 0
  %178 = vmatprep.subr.bf16.mxu0 0
  %179 = vmatpush1.bf16.msra.mxu0 0
  %180 = vmatprep.subr.bf16.mxu0 0
  %181 = vmatpush1.bf16.msra.mxu0 0
  %182 = vmatprep.subr.bf16.mxu0 0
  %183 = vmatpush1.bf16.msra.mxu0 0
  %184 = vmatprep.subr.bf16.mxu0 0
  %185 = vmatpush1.bf16.msra.mxu0 0
  %186 = vmatprep.subr.bf16.mxu0 0
  %187 = vmatpush1.bf16.msra.mxu0 0
  %188 = vmatprep.mubr.bf16.mxu0 0
  %189 = vmatmul.mubr.bf16.gmra.mrb[0].mxu0 %v92
  %v190 = vpop.f32.mrb[0].mxu0
  %v191 = vadd.f32 %v58, %v190
  %v192 = vpop.f32.mrb[0].mxu0
  %v193 = vpop.f32.mrb[0].mxu0
  %v194 = vadd.f32 %v58, %v193
  %v195 = vpop.f32.mrb[0].mxu0
  %196 = vmatprep.mubr.bf16.mxu0 0
  %197 = vmatmul.mubr.bf16.gmra.mrb[0].mxu0 %v93
  %v198 = vpop.f32.mrb[0].mxu0
  %v199 = vadd.f32 %v58, %v198
  %v200 = vpop.f32.mrb[0].mxu0
  %v201 = vpop.f32.mrb[0].mxu0
  %v202 = vadd.f32 %v58, %v201
  %v203 = vpop.f32.mrb[0].mxu0
  %204 = vmatprep.mubr.bf16.mxu0 0
  %205 = vmatmul.mubr.bf16.gmra.mrb[0].mxu0 %v94
  %v206 = vpop.f32.mrb[0].mxu0
  %v207 = vadd.f32 %v58, %v206
  %v208 = vpop.f32.mrb[0].mxu0
  %v209 = vpop.f32.mrb[0].mxu0
  %v210 = vadd.f32 %v58, %v209
  %v211 = vpop.f32.mrb[0].mxu0
  %212 = vmatprep.mubr.bf16.mxu0 0
  %213 = vmatmul.mubr.bf16.gmra.mrb[0].mxu0 %v95
  %v214 = vpop.f32.mrb[0].mxu0
  %v215 = vadd.f32 %v58, %v214
  %v216 = vpop.f32.mrb[0].mxu0
  %v217 = vpop.f32.mrb[0].mxu0
  %v218 = vadd.f32 %v58, %v217
  %v219 = vpop.f32.mrb[0].mxu0
  %220 = vmatprep.mubr.bf16.mxu0 0
  %221 = vmatmul.mubr.bf16.gmra.mrb[0].mxu0 %v96
  %v222 = vpop.f32.mrb[0].mxu0
  %v223 = vadd.f32 %v58, %v222
  %v224 = vpop.f32.mrb[0].mxu0
  %v225 = vpop.f32.mrb[0].mxu0
  %v226 = vadd.f32 %v58, %v225
  %v227 = vpop.f32.mrb[0].mxu0
  %228 = vmatprep.mubr.bf16.mxu0 0
  %229 = vmatmul.mubr.bf16.gmra.mrb[0].mxu0 %v97
  %v230 = vpop.f32.mrb[0].mxu0
  %v231 = vadd.f32 %v58, %v230
  %v232 = vpop.f32.mrb[0].mxu0
  %v233 = vpop.f32.mrb[0].mxu0
  %v234 = vadd.f32 %v58, %v233
  %v235 = vpop.f32.mrb[0].mxu0
  %236 = vmatprep.mubr.bf16.mxu0 0
  %237 = vmatmul.mubr.bf16.gmra.mrb[0].mxu0 %v98
  %v238 = vpop.f32.mrb[0].mxu0
  %v239 = vadd.f32 %v58, %v238
  %v240 = vpop.f32.mrb[0].mxu0
  %v241 = vpop.f32.mrb[0].mxu0
  %v242 = vadd.f32 %v58, %v241
  %v243 = vpop.f32.mrb[0].mxu0
  %244 = vmatprep.mubr.bf16.mxu0 0
  %245 = vmatmul.mubr.bf16.gmra.mrb[0].mxu0 %v99
  %v246 = vpop.f32.mrb[0].mxu0
  %v247 = vadd.f32 %v58, %v246
  %v248 = vpop.f32.mrb[0].mxu0
  %v249 = vpop.f32.mrb[0].mxu0
  %v250 = vadd.f32 %v58, %v249
  %v251 = vpop.f32.mrb[0].mxu0
  %252 = vdwg.mxu0
  %vm253 = vcmask 130048
  %v254 = vsel %vm253, %v191, 0.0
  %v255 = vsel %vm253, %v194, 0.0
  %v256 = vadd.f32 %v254, %v255
  %v257 = vsel %vm253, %v199, 0.0
  %v258 = vadd.f32 %v256, %v257
  %v259 = vsel %vm253, %v202, 0.0
  %v260 = vadd.f32 %v258, %v259
  %v261 = vsel %vm253, %v207, 0.0
  %v262 = vadd.f32 %v260, %v261
  %v263 = vsel %vm253, %v210, 0.0
  %v264 = vadd.f32 %v262, %v263
  %v265 = vsel %vm253, %v215, 0.0
  %v266 = vadd.f32 %v264, %v265
  %v267 = vsel %vm253, %v218, 0.0
  %v268 = vadd.f32 %v266, %v267
  %v269 = vsel %vm253, %v223, 0.0
  %v270 = vadd.f32 %v268, %v269
  %v271 = vsel %vm253, %v226, 0.0
  %v272 = vadd.f32 %v270, %v271
  %v273 = vsel %vm253, %v231, 0.0
  %v274 = vadd.f32 %v272, %v273
  %v275 = vsel %vm253, %v234, 0.0
  %v276 = vadd.f32 %v274, %v275
  %v277 = vsel %vm253, %v239, 0.0
  %v278 = vadd.f32 %v276, %v277
  %v279 = vsel %vm253, %v242, 0.0
  %v280 = vadd.f32 %v278, %v279
  %v281 = vsel %vm253, %v247, 0.0
  %v282 = vadd.f32 %v280, %v281
  %v283 = vsel %vm253, %v250, 0.0
  %v284 = vadd.f32 %v282, %v283
  %v285 = vrot.slane %v284, 4
  %v286 = vadd.f32 %v284, %v285
  %v287 = vrot.slane %v286, 2
  %v288 = vadd.f32 %v286, %v287
  %v289 = vrot.slane %v288, 1
  %v290 = vadd.f32 %v288, %v289
  %v291 = vrcp.pop 128.0
  %v292 = vmul.f32 %v290, %v291
  %v293 = vsub.f32 %v191, %v292
  %v294 = vsub.f32 %v194, %v292
  %v295 = vsub.f32 %v199, %v292
  %v296 = vsub.f32 %v202, %v292
  %v297 = vsub.f32 %v207, %v292
  %v298 = vsub.f32 %v210, %v292
  %v299 = vsub.f32 %v215, %v292
  %v300 = vsub.f32 %v218, %v292
  %v301 = vsub.f32 %v223, %v292
  %v302 = vsub.f32 %v226, %v292
  %v303 = vsub.f32 %v231, %v292
  %v304 = vsub.f32 %v234, %v292
  %v305 = vsub.f32 %v239, %v292
  %v306 = vsub.f32 %v242, %v292
  %v307 = vsub.f32 %v247, %v292
  %v308 = vsub.f32 %v250, %v292
  %v309 = vmul.f32 %v293, %v293
  %v310 = vmul.f32 %v294, %v294
  %v311 = vmul.f32 %v295, %v295
  %v312 = vmul.f32 %v296, %v296
  %v313 = vmul.f32 %v297, %v297
  %v314 = vmul.f32 %v298, %v298
  %v315 = vmul.f32 %v299, %v299
  %v316 = vmul.f32 %v300, %v300
  %v317 = vmul.f32 %v301, %v301
  %v318 = vmul.f32 %v302, %v302
  %v319 = vmul.f32 %v303, %v303
  %v320 = vmul.f32 %v304, %v304
  %v321 = vmul.f32 %v305, %v305
  %v322 = vmul.f32 %v306, %v306
  %v323 = vmul.f32 %v307, %v307
  %v324 = vmul.f32 %v308, %v308
  %v325 = vsel %vm253, %v309, 0.0
  %v326 = vsel %vm253, %v310, 0.0
  %v327 = vadd.f32 %v325, %v326
  %v328 = vsel %vm253, %v311, 0.0
  %v329 = vadd.f32 %v327, %v328
  %v330 = vsel %vm253, %v312, 0.0
  %v331 = vadd.f32 %v329, %v330
  %v332 = vsel %vm253, %v313, 0.0
  %v333 = vadd.f32 %v331, %v332
  %v334 = vsel %vm253, %v314, 0.0
  %v335 = vadd.f32 %v333, %v334
  %v336 = vsel %vm253, %v315, 0.0
  %v337 = vadd.f32 %v335, %v336
  %v338 = vsel %vm253, %v316, 0.0
  %v339 = vadd.f32 %v337, %v338
  %v340 = vsel %vm253, %v317, 0.0
  %v341 = vadd.f32 %v339, %v340
  %v342 = vsel %vm253, %v318, 0.0
  %v343 = vadd.f32 %v341, %v342
  %v344 = vsel %vm253, %v319, 0.0
  %v345 = vadd.f32 %v343, %v344
  %v346 = vsel %vm253, %v320, 0.0
  %v347 = vadd.f32 %v345, %v346
  %v348 = vsel %vm253, %v321, 0.0
  %v349 = vadd.f32 %v347, %v348
  %v350 = vsel %vm253, %v322, 0.0
  %v351 = vadd.f32 %v349, %v350
  %v352 = vsel %vm253, %v323, 0.0
  %v353 = vadd.f32 %v351, %v352
  %v354 = vsel %vm253, %v324, 0.0
  %v355 = vadd.f32 %v353, %v354
  %v356 = vrot.slane %v355, 4
  %v357 = vadd.f32 %v355, %v356
  %v358 = vrot.slane %v357, 2
  %v359 = vadd.f32 %v357, %v358
  %v360 = vrot.slane %v359, 1
  %v361 = vadd.f32 %v359, %v360
  %v362 = vmul.f32 %v361, %v291
  %v363 = vld [vmem:[%s3] sm:$0x1]
  %v364 = vadd.f32 %v362, 1e-05
  %v365 = vrsqrt.pop %v364
  %v366 = vmul.f32 %v363, %v365
  %v368 = vlaneseq
  %v369 = vshrl.u32 %v368, 7
  %v370 = vsub.s32 0, %v369
  %v371 = vrot.slane %v366, %v370
  %v373 = vmul.f32 %v293, %v371
  %v374 = vmul.f32 %v294, %v371
  %v375 = vmul.f32 %v295, %v371
  %v376 = vmul.f32 %v296, %v371
  %v377 = vmul.f32 %v297, %v371
  %v378 = vmul.f32 %v298, %v371
  %v379 = vmul.f32 %v299, %v371
  %v380 = vmul.f32 %v300, %v371
  %v381 = vmul.f32 %v301, %v371
  %v382 = vmul.f32 %v302, %v371
  %v383 = vmul.f32 %v303, %v371
  %v384 = vmul.f32 %v304, %v371
  %v385 = vmul.f32 %v305, %v371
  %v386 = vmul.f32 %v306, %v371
  %v387 = vmul.f32 %v307, %v371
  %v388 = vmul.f32 %v308, %v371
  %v389 = vld [vmem:[%s4] sm:$0x1]
  %v391 = vlaneseq
  %v392 = vshrl.u32 %v391, 7
  %v393 = vsub.s32 0, %v392
  %v394 = vrot.slane %v389, %v393
  %v396 = vadd.f32 %v373, %v394
  %v397 = vadd.f32 %v374, %v394
  %v398 = vadd.f32 %v375, %v394
  %v399 = vadd.f32 %v376, %v394
  %v400 = vadd.f32 %v377, %v394
  %v401 = vadd.f32 %v378, %v394
  %v402 = vadd.f32 %v379, %v394
  %v403 = vadd.f32 %v380, %v394
  %v404 = vadd.f32 %v381, %v394
  %v405 = vadd.f32 %v382, %v394
  %v406 = vadd.f32 %v383, %v394
  %v407 = vadd.f32 %v384, %v394
  %v408 = vadd.f32 %v385, %v394
  %v409 = vadd.f32 %v386, %v394
  %v410 = vadd.f32 %v387, %v394
  %v411 = vadd.f32 %v388, %v394
  %v412 = vmax.f32 %v396, 0.0
  %v413 = vmax.f32 %v397, 0.0
  %v414 = vmax.f32 %v398, 0.0
  %v415 = vmax.f32 %v399, 0.0
  %v416 = vmax.f32 %v400, 0.0
  %v417 = vmax.f32 %v401, 0.0
  %v418 = vmax.f32 %v402, 0.0
  %v419 = vmax.f32 %v403, 0.0
  %v420 = vmax.f32 %v404, 0.0
  %v421 = vmax.f32 %v405, 0.0
  %v422 = vmax.f32 %v406, 0.0
  %v423 = vmax.f32 %v407, 0.0
  %v424 = vmax.f32 %v408, 0.0
  %v425 = vmax.f32 %v409, 0.0
  %v426 = vmax.f32 %v410, 0.0
  %v427 = vmax.f32 %v411, 0.0
  %v428 = vpack.c.bf16 %v413, %v412
  %v429 = vpack.c.bf16 %v415, %v414
  %v430 = vpack.c.bf16 %v417, %v416
  %v431 = vpack.c.bf16 %v419, %v418
  %v432 = vpack.c.bf16 %v421, %v420
  %v433 = vpack.c.bf16 %v423, %v422
  %v434 = vpack.c.bf16 %v425, %v424
  %v435 = vpack.c.bf16 %v427, %v426
  %v444 = vunpack.c.l.b16 %v428
  %v445 = vunpack.c.h.b16 %v428
  %v446 = vunpack.c.l.b16 %v429
  %v447 = vunpack.c.h.b16 %v429
  %v448 = vunpack.c.l.b16 %v430
  %v449 = vunpack.c.h.b16 %v430
  %v450 = vunpack.c.l.b16 %v431
  %v451 = vunpack.c.h.b16 %v431
  %v452 = vunpack.c.l.b16 %v432
  %v453 = vunpack.c.h.b16 %v432
  %v454 = vunpack.c.l.b16 %v433
  %v455 = vunpack.c.h.b16 %v433
  %v456 = vunpack.c.l.b16 %v434
  %v457 = vunpack.c.h.b16 %v434
  %v458 = vunpack.c.l.b16 %v435
  %v459 = vunpack.c.h.b16 %v435
  %v460 = vpack.c.b16 %v444, %v444
  %v461 = vpack.c.b16 %v445, %v445
  %v462 = vpack.c.b16 %v446, %v446
  %v463 = vpack.c.b16 %v447, %v447
  %v464 = vpack.c.b16 %v448, %v448
  %v465 = vpack.c.b16 %v449, %v449
  %v466 = vpack.c.b16 %v450, %v450
  %v467 = vpack.c.b16 %v451, %v451
  %v468 = vpack.c.b16 %v452, %v452
  %v469 = vpack.c.b16 %v453, %v453
  %v470 = vpack.c.b16 %v454, %v454
  %v471 = vpack.c.b16 %v455, %v455
  %v472 = vpack.c.b16 %v456, %v456
  %v473 = vpack.c.b16 %v457, %v457
  %v474 = vpack.c.b16 %v458, %v458
  %v475 = vpack.c.b16 %v459, %v459
  %vm492 = vcmask 125952
  %493 = vst.msk [vmem:[%s5] sm:$0xf] %vm492, %v460
  %494 = vst.msk [vmem:[%s5 + $0x4] sm:$0xf] %vm492, %v461
  %495 = vst.msk [vmem:[%s5 + $0x8] sm:$0xf] %vm492, %v462
  %496 = vst.msk [vmem:[%s5 + $0xc] sm:$0xf] %vm492, %v463
  %497 = vst.msk [vmem:[%s5 + $0x10] sm:$0xf] %vm492, %v464
  %498 = vst.msk [vmem:[%s5 + $0x14] sm:$0xf] %vm492, %v465
  %499 = vst.msk [vmem:[%s5 + $0x18] sm:$0xf] %vm492, %v466
  %500 = vst.msk [vmem:[%s5 + $0x1c] sm:$0xf] %vm492, %v467
  %501 = vst.msk [vmem:[%s5 + $0x20] sm:$0xf] %vm492, %v468
  %502 = vst.msk [vmem:[%s5 + $0x24] sm:$0xf] %vm492, %v469
  %503 = vst.msk [vmem:[%s5 + $0x28] sm:$0xf] %vm492, %v470
  %504 = vst.msk [vmem:[%s5 + $0x2c] sm:$0xf] %vm492, %v471
  %505 = vst.msk [vmem:[%s5 + $0x30] sm:$0xf] %vm492, %v472
  %506 = vst.msk [vmem:[%s5 + $0x34] sm:$0xf] %vm492, %v473
  %507 = vst.msk [vmem:[%s5 + $0x38] sm:$0xf] %vm492, %v474
  %508 = vst.msk [vmem:[%s5 + $0x3c] sm:$0xf] %vm492, %v475
  // Predicated region
  $region22: #{net_forward.5} parent=0 // pred_check
    _
  $region23: #{net_forward.5} parent=0 // pred_check_branch
    %510 = sbr.rel (0) target = $region25
  $region24: #{net_forward.5} parent=0 // pred_region
    _
  $region25: #{net_forward.5} parent=0 // pred_fallthru
    _
  // Predicated region
  $region26: #{net_forward.5} parent=0 // pred_check
    _
  $region27: #{net_forward.5} parent=0 // pred_check_branch
    %512 = sbr.rel (0) target = $region29
  $region28: #{net_forward.5} parent=0 // pred_region
    _
  $region29: #{net_forward.5} parent=0 // pred_fallthru
    _

// kernel: net_forward.6
$region0: #{net_forward.6}
  #allocation0 [shape = 'u32[]', space=smem, size = 0x4, offset = 0x4, fixed_abs, tag = 'smem constant byte address 0x4 - core index']
  #allocation1 [shape = 'u32[144,128]{1,0:T(1,128)}', space=vmem, size = 0x12000, scoped, tag = 'internal scratch']
  %s0 = inlined_call_operand.vmem [shape: bf16[32,256], index: 0, kind: input, shape index: {}]
  %s1 = inlined_call_operand.vmem [shape: bf16[256,32], index: 1, kind: input, shape index: {}]
  %s2 = inlined_call_operand.vmem [shape: f32[1,32], index: 2, kind: input, shape index: {}]
  %s3 = inlined_call_operand.vmem [shape: f32[1,32], index: 3, kind: input, shape index: {}]
  %s4 = inlined_call_operand.vmem [shape: f32[1,32], index: 4, kind: input, shape index: {}]
  %s5 = inlined_call_operand.vmem [shape: bf16[32,32], index: 5, kind: output, shape index: {}]
  %s6 = sld [smem:[#allocation0]]
  $region30: #{net_forward.6} parent=0
    _
  %s8 = ssub.s32 1, %s6
  %s9 = scalar_select 0, %s8, %s6
  // Predicated region
  $region2: #{net_forward.6} parent=0 // pred_check
    _
  $region3: #{net_forward.6} parent=0 // pred_check_branch
    %11 = sbr.rel (0) target = $region5
  $region4: #{net_forward.6} parent=0 // pred_region
    _
  $region5: #{net_forward.6} parent=0 // pred_fallthru
    _
  // Predicated region
  $region6: #{net_forward.6} parent=0 // pred_check
    _
  $region7: #{net_forward.6} parent=0 // pred_check_branch
    %13 = sbr.rel (0) target = $region9
  $region8: #{net_forward.6} parent=0 // pred_region
    _
  $region9: #{net_forward.6} parent=0 // pred_fallthru
    _
  // Predicated region
  $region10: #{net_forward.6} parent=0 // pred_check
    _
  $region11: #{net_forward.6} parent=0 // pred_check_branch
    %15 = sbr.rel (0) target = $region13
  $region12: #{net_forward.6} parent=0 // pred_region
    _
  $region13: #{net_forward.6} parent=0 // pred_fallthru
    _
  // Predicated region
  $region14: #{net_forward.6} parent=0 // pred_check
    _
  $region15: #{net_forward.6} parent=0 // pred_check_branch
    %17 = sbr.rel (0) target = $region17
  $region16: #{net_forward.6} parent=0 // pred_region
    _
  $region17: #{net_forward.6} parent=0 // pred_fallthru
    _
  // Predicated region
  $region18: #{net_forward.6} parent=0 // pred_check
    _
  $region19: #{net_forward.6} parent=0 // pred_check_branch
    %19 = sbr.rel (0) target = $region21
  $region20: #{net_forward.6} parent=0 // pred_region
    _
  $region21: #{net_forward.6} parent=0 // pred_fallthru
    _
  %v21 = vld [vmem:[%s0] sm:$0xff]
  %v22 = vld [vmem:[%s0 + $0x8] sm:$0xff]
  %v23 = vld [vmem:[%s0 + $0x10] sm:$0xff]
  %v24 = vld [vmem:[%s0 + $0x18] sm:$0xff]
  %v25 = vld [vmem:[%s1] sm:$0xf]
  %v26 = vld [vmem:[%s1 + $0x4] sm:$0xf]
  %v27 = vld [vmem:[%s1 + $0x8] sm:$0xf]
  %v28 = vld [vmem:[%s1 + $0xc] sm:$0xf]
  %v29 = vld [vmem:[%s1 + $0x10] sm:$0xf]
  %v30 = vld [vmem:[%s1 + $0x14] sm:$0xf]
  %v31 = vld [vmem:[%s1 + $0x18] sm:$0xf]
  %v32 = vld [vmem:[%s1 + $0x1c] sm:$0xf]
  %v33 = vld [vmem:[%s1 + $0x20] sm:$0xf]
  %v34 = vld [vmem:[%s1 + $0x24] sm:$0xf]
  %v35 = vld [vmem:[%s1 + $0x28] sm:$0xf]
  %v36 = vld [vmem:[%s1 + $0x2c] sm:$0xf]
  %v37 = vld [vmem:[%s1 + $0x30] sm:$0xf]
  %v38 = vld [vmem:[%s1 + $0x34] sm:$0xf]
  %v39 = vld [vmem:[%s1 + $0x38] sm:$0xf]
  %v40 = vld [vmem:[%s1 + $0x3c] sm:$0xf]
  %v41 = vld [vmem:[%s1 + $0x40] sm:$0xf]
  %v42 = vld [vmem:[%s1 + $0x44] sm:$0xf]
  %v43 = vld [vmem:[%s1 + $0x48] sm:$0xf]
  %v44 = vld [vmem:[%s1 + $0x4c] sm:$0xf]
  %v45 = vld [vmem:[%s1 + $0x50] sm:$0xf]
  %v46 = vld [vmem:[%s1 + $0x54] sm:$0xf]
  %v47 = vld [vmem:[%s1 + $0x58] sm:$0xf]
  %v48 = vld [vmem:[%s1 + $0x5c] sm:$0xf]
  %v49 = vld [vmem:[%s1 + $0x60] sm:$0xf]
  %v50 = vld [vmem:[%s1 + $0x64] sm:$0xf]
  %v51 = vld [vmem:[%s1 + $0x68] sm:$0xf]
  %v52 = vld [vmem:[%s1 + $0x6c] sm:$0xf]
  %v53 = vld [vmem:[%s1 + $0x70] sm:$0xf]
  %v54 = vld [vmem:[%s1 + $0x74] sm:$0xf]
  %v55 = vld [vmem:[%s1 + $0x78] sm:$0xf]
  %v56 = vld [vmem:[%s1 + $0x7c] sm:$0xf]
  %v57 = vld [vmem:[%s2] sm:$0x1]
  %v59 = vlaneseq
  %v60 = vshrl.u32 %v59, 7
  %v61 = vsub.s32 0, %v60
  %v62 = vrot.slane %v57, %v61
  %v68 = vunpack.c.l.b16 %v21
  %v69 = vunpack.c.h.b16 %v21
  %v70 = vunpack.c.l.b16 %v22
  %v71 = vunpack.c.h.b16 %v22
  %v72 = vunpack.c.l.b16 %v23
  %v73 = vunpack.c.h.b16 %v23
  %v74 = vunpack.c.l.b16 %v24
  %v75 = vunpack.c.h.b16 %v24
  %v76 = vpack.c.b16 %v70, %v68
  %v77 = vpack.c.b16 %v71, %v69
  %v78 = vpack.c.b16 %v74, %v72
  %v79 = vpack.c.b16 %v75, %v73
  %v116 = vunpack.c.l.b16 %v25
  %v117 = vunpack.c.l.b16 %v26
  %v118 = vunpack.c.l.b16 %v27
  %v119 = vunpack.c.l.b16 %v28
  %v120 = vunpack.c.l.b16 %v29
  %v121 = vunpack.c.l.b16 %v30
  %v122 = vunpack.c.l.b16 %v31
  %v123 = vunpack.c.l.b16 %v32
  %v124 = vunpack.c.l.b16 %v33
  %v125 = vunpack.c.l.b16 %v34
  %v126 = vunpack.c.l.b16 %v35
  %v127 = vunpack.c.l.b16 %v36
  %v128 = vunpack.c.l.b16 %v37
  %v129 = vunpack.c.l.b16 %v38
  %v130 = vunpack.c.l.b16 %v39
  %v131 = vunpack.c.l.b16 %v40
  %v132 = vunpack.c.l.b16 %v41
  %v133 = vunpack.c.l.b16 %v42
  %v134 = vunpack.c.l.b16 %v43
  %v135 = vunpack.c.l.b16 %v44
  %v136 = vunpack.c.l.b16 %v45
  %v137 = vunpack.c.l.b16 %v46
  %v138 = vunpack.c.l.b16 %v47
  %v139 = vunpack.c.l.b16 %v48
  %v140 = vunpack.c.l.b16 %v49
  %v141 = vunpack.c.l.b16 %v50
  %v142 = vunpack.c.l.b16 %v51
  %v143 = vunpack.c.l.b16 %v52
  %v144 = vunpack.c.l.b16 %v53
  %v145 = vunpack.c.l.b16 %v54
  %v146 = vunpack.c.l.b16 %v55
  %v147 = vunpack.c.l.b16 %v56
  %v148 = vpack.c.b16 %v117, %v116
  %v149 = vpack.c.b16 %v119, %v118
  %v150 = vpack.c.b16 %v121, %v120
  %v151 = vpack.c.b16 %v123, %v122
  %v152 = vpack.c.b16 %v125, %v124
  %v153 = vpack.c.b16 %v127, %v126
  %v154 = vpack.c.b16 %v129, %v128
  %v155 = vpack.c.b16 %v131, %v130
  %v156 = vpack.c.b16 %v133, %v132
  %v157 = vpack.c.b16 %v135, %v134
  %v158 = vpack.c.b16 %v137, %v136
  %v159 = vpack.c.b16 %v139, %v138
  %v160 = vpack.c.b16 %v141, %v140
  %v161 = vpack.c.b16 %v143, %v142
  %v162 = vpack.c.b16 %v145, %v144
  %v163 = vpack.c.b16 %v147, %v146
  %180 = vmatprep.subr.bf16.mxu0 0
  %181 = vmatpush1.bf16.msra.mxu0 %v148
  %182 = vmatprep.subr.bf16.mxu0 0
  %183 = vmatpush1.bf16.msra.mxu0 %v149
  %184 = vmatprep.subr.bf16.mxu0 0
  %185 = vmatpush1.bf16.msra.mxu0 %v150
  %186 = vmatprep.subr.bf16.mxu0 0
  %187 = vmatpush1.bf16.msra.mxu0 %v151
  %188 = vmatprep.subr.bf16.mxu0 0
  %189 = vmatpush1.bf16.msra.mxu0 %v152
  %190 = vmatprep.subr.bf16.mxu0 0
  %191 = vmatpush1.bf16.msra.mxu0 %v153
  %192 = vmatprep.subr.bf16.mxu0 0
  %193 = vmatpush1.bf16.msra.mxu0 %v154
  %194 = vmatprep.subr.bf16.mxu0 0
  %195 = vmatpush1.bf16.msra.mxu0 %v155
  %196 = vmatprep.subr.bf16.mxu0 0
  %197 = vmatpush1.bf16.msra.mxu0 %v156
  %198 = vmatprep.subr.bf16.mxu0 0
  %199 = vmatpush1.bf16.msra.mxu0 %v157
  %200 = vmatprep.subr.bf16.mxu0 0
  %201 = vmatpush1.bf16.msra.mxu0 %v158
  %202 = vmatprep.subr.bf16.mxu0 0
  %203 = vmatpush1.bf16.msra.mxu0 %v159
  %204 = vmatprep.subr.bf16.mxu0 0
  %205 = vmatpush1.bf16.msra.mxu0 %v160
  %206 = vmatprep.subr.bf16.mxu0 0
  %207 = vmatpush1.bf16.msra.mxu0 %v161
  %208 = vmatprep.subr.bf16.mxu0 0
  %209 = vmatpush1.bf16.msra.mxu0 %v162
  %210 = vmatprep.subr.bf16.mxu0 0
  %211 = vmatpush1.bf16.msra.mxu0 %v163
  %212 = vmatprep.mubr.bf16.mxu0 %v77
  %213 = vmatmul.mubr.bf16.gmra.mrb[0].mxu0 %v76
  %v214 = vpop.f32.mrb[0].mxu0
  %v215 = vadd.f32 %v62, %v214
  %v216 = vpop.f32.mrb[0].mxu0
  %v217 = vpop.f32.mrb[0].mxu0
  %v218 = vadd.f32 %v62, %v217
  %v219 = vpop.f32.mrb[0].mxu0
  %220 = vmatprep.mubr.bf16.mxu0 %v79
  %221 = vmatmul.mubr.bf16.gmra.mrb[0].mxu0 %v78
  %v222 = vpop.f32.mrb[0].mxu0
  %v223 = vadd.f32 %v62, %v222
  %v224 = vpop.f32.mrb[0].mxu0
  %v225 = vpop.f32.mrb[0].mxu0
  %v226 = vadd.f32 %v62, %v225
  %v227 = vpop.f32.mrb[0].mxu0
  %228 = vdwg.mxu0
  %vm229 = vcmask 261120
  %v230 = vsel %vm229, %v215, 0.0
  %v231 = vsel %vm229, %v218, 0.0
  %v232 = vadd.f32 %v230, %v231
  %v233 = vsel %vm229, %v223, 0.0
  %v234 = vadd.f32 %v232, %v233
  %v235 = vsel %vm229, %v226, 0.0
  %v236 = vadd.f32 %v234, %v235
  %v237 = vrot.slane %v236, 4
  %v238 = vadd.f32 %v236, %v237
  %v239 = vrot.slane %v238, 2
  %v240 = vadd.f32 %v238, %v239
  %v241 = vrot.slane %v240, 1
  %v242 = vadd.f32 %v240, %v241
  %v243 = vrcp.pop 32.0
  %v244 = vmul.f32 %v242, %v243
  %v245 = vsub.f32 %v215, %v244
  %v246 = vsub.f32 %v218, %v244
  %v247 = vsub.f32 %v223, %v244
  %v248 = vsub.f32 %v226, %v244
  %v249 = vmul.f32 %v245, %v245
  %v250 = vmul.f32 %v246, %v246
  %v251 = vmul.f32 %v247, %v247
  %v252 = vmul.f32 %v248, %v248
  %v253 = vsel %vm229, %v249, 0.0
  %v254 = vsel %vm229, %v250, 0.0
  %v255 = vadd.f32 %v253, %v254
  %v256 = vsel %vm229, %v251, 0.0
  %v257 = vadd.f32 %v255, %v256
  %v258 = vsel %vm229, %v252, 0.0
  %v259 = vadd.f32 %v257, %v258
  %v260 = vrot.slane %v259, 4
  %v261 = vadd.f32 %v259, %v260
  %v262 = vrot.slane %v261, 2
  %v263 = vadd.f32 %v261, %v262
  %v264 = vrot.slane %v263, 1
  %v265 = vadd.f32 %v263, %v264
  %v266 = vmul.f32 %v265, %v243
  %v267 = vld [vmem:[%s3] sm:$0x1]
  %v268 = vadd.f32 %v266, 1e-05
  %v269 = vrsqrt.pop %v268
  %v270 = vmul.f32 %v267, %v269
  %v272 = vlaneseq
  %v273 = vshrl.u32 %v272, 7
  %v274 = vsub.s32 0, %v273
  %v275 = vrot.slane %v270, %v274
  %v277 = vmul.f32 %v245, %v275
  %v278 = vmul.f32 %v246, %v275
  %v279 = vmul.f32 %v247, %v275
  %v280 = vmul.f32 %v248, %v275
  %v281 = vld [vmem:[%s4] sm:$0x1]
  %v283 = vlaneseq
  %v284 = vshrl.u32 %v283, 7
  %v285 = vsub.s32 0, %v284
  %v286 = vrot.slane %v281, %v285
  %v288 = vadd.f32 %v277, %v286
  %v289 = vadd.f32 %v278, %v286
  %v290 = vadd.f32 %v279, %v286
  %v291 = vadd.f32 %v280, %v286
  %v292 = vmax.f32 %v288, 0.0
  %v293 = vmax.f32 %v289, 0.0
  %v294 = vmax.f32 %v290, 0.0
  %v295 = vmax.f32 %v291, 0.0
  %v296 = vpack.c.bf16 %v293, %v292
  %v297 = vpack.c.bf16 %v295, %v294
  %v300 = vunpack.c.l.b16 %v296
  %v301 = vunpack.c.h.b16 %v296
  %v302 = vunpack.c.l.b16 %v297
  %v303 = vunpack.c.h.b16 %v297
  %v304 = vpack.c.b16 %v300, %v300
  %v305 = vpack.c.b16 %v301, %v301
  %v306 = vpack.c.b16 %v302, %v302
  %v307 = vpack.c.b16 %v303, %v303
  %vm312 = vcmask 257024
  %313 = vst.msk [vmem:[%s5] sm:$0xf] %vm312, %v304
  %314 = vst.msk [vmem:[%s5 + $0x4] sm:$0xf] %vm312, %v305
  %315 = vst.msk [vmem:[%s5 + $0x8] sm:$0xf] %vm312, %v306
  %316 = vst.msk [vmem:[%s5 + $0xc] sm:$0xf] %vm312, %v307
  // Predicated region
  $region22: #{net_forward.6} parent=0 // pred_check
    _
  $region23: #{net_forward.6} parent=0 // pred_check_branch
    %318 = sbr.rel (0) target = $region25
  $region24: #{net_forward.6} parent=0 // pred_region
    _
  $region25: #{net_forward.6} parent=0 // pred_fallthru
    _
  // Predicated region
  $region26: #{net_forward.6} parent=0 // pred_check
    _
  $region27: #{net_forward.6} parent=0 // pred_check_branch
    %320 = sbr.rel (0) target = $region29
  $region28: #{net_forward.6} parent=0 // pred_region
    _
  $region29: #{net_forward.6} parent=0 // pred_fallthru
    _

// kernel: net_forward.7
$region0: #{net_forward.7}
  #allocation0 [shape = 'u32[]', space=smem, size = 0x4, offset = 0x4, fixed_abs, tag = 'smem constant byte address 0x4 - core index']
  #allocation1 [shape = 'u32[144,128]{1,0:T(1,128)}', space=vmem, size = 0x12000, scoped, tag = 'internal scratch']
  %s0 = inlined_call_operand.vmem [shape: bf16[2,512], index: 0, kind: input, shape index: {}]
  %s1 = inlined_call_operand.vmem [shape: bf16[512,64], index: 1, kind: input, shape index: {}]
  %s2 = inlined_call_operand.vmem [shape: f32[1,64], index: 2, kind: input, shape index: {}]
  %s3 = inlined_call_operand.vmem [shape: bf16[64,64], index: 3, kind: input, shape index: {}]
  %s4 = inlined_call_operand.vmem [shape: f32[1,64], index: 4, kind: input, shape index: {}]
  %s5 = inlined_call_operand.vmem [shape: bf16[64,7], index: 5, kind: input, shape index: {}]
  %s6 = inlined_call_operand.vmem [shape: f32[1,7], index: 6, kind: input, shape index: {}]
  %s7 = inlined_call_operand.vmem [shape: f32[2,7], index: 7, kind: output, shape index: {}]
  %s8 = sld [smem:[#allocation0]]
  $region38: #{net_forward.7} parent=0
    _
  %s10 = ssub.s32 1, %s8
  %s11 = scalar_select 0, %s10, %s8
  // Predicated region
  $region2: #{net_forward.7} parent=0 // pred_check
    _
  $region3: #{net_forward.7} parent=0 // pred_check_branch
    %13 = sbr.rel (0) target = $region5
  $region4: #{net_forward.7} parent=0 // pred_region
    _
  $region5: #{net_forward.7} parent=0 // pred_fallthru
    _
  // Predicated region
  $region6: #{net_forward.7} parent=0 // pred_check
    _
  $region7: #{net_forward.7} parent=0 // pred_check_branch
    %15 = sbr.rel (0) target = $region9
  $region8: #{net_forward.7} parent=0 // pred_region
    _
  $region9: #{net_forward.7} parent=0 // pred_fallthru
    _
  // Predicated region
  $region10: #{net_forward.7} parent=0 // pred_check
    _
  $region11: #{net_forward.7} parent=0 // pred_check_branch
    %17 = sbr.rel (0) target = $region13
  $region12: #{net_forward.7} parent=0 // pred_region
    _
  $region13: #{net_forward.7} parent=0 // pred_fallthru
    _
  // Predicated region
  $region14: #{net_forward.7} parent=0 // pred_check
    _
  $region15: #{net_forward.7} parent=0 // pred_check_branch
    %19 = sbr.rel (0) target = $region17
  $region16: #{net_forward.7} parent=0 // pred_region
    _
  $region17: #{net_forward.7} parent=0 // pred_fallthru
    _
  // Predicated region
  $region18: #{net_forward.7} parent=0 // pred_check
    _
  $region19: #{net_forward.7} parent=0 // pred_check_branch
    %21 = sbr.rel (0) target = $region21
  $region20: #{net_forward.7} parent=0 // pred_region
    _
  $region21: #{net_forward.7} parent=0 // pred_fallthru
    _
  // Predicated region
  $region22: #{net_forward.7} parent=0 // pred_check
    _
  $region23: #{net_forward.7} parent=0 // pred_check_branch
    %23 = sbr.rel (0) target = $region25
  $region24: #{net_forward.7} parent=0 // pred_region
    _
  $region25: #{net_forward.7} parent=0 // pred_fallthru
    _
  // Predicated region
  $region26: #{net_forward.7} parent=0 // pred_check
    _
  $region27: #{net_forward.7} parent=0 // pred_check_branch
    %25 = sbr.rel (0) target = $region29
  $region28: #{net_forward.7} parent=0 // pred_region
    _
  $region29: #{net_forward.7} parent=0 // pred_fallthru
    _
  %v27 = vld [vmem:[%s0] sm:$0xf]
  %v28 = vld [vmem:[%s1] sm:$0xf]
  %v29 = vld [vmem:[%s1 + $0x4] sm:$0xf]
  %v30 = vld [vmem:[%s1 + $0x8] sm:$0xf]
  %v31 = vld [vmem:[%s1 + $0xc] sm:$0xf]
  %v32 = vld [vmem:[%s1 + $0x10] sm:$0xf]
  %v33 = vld [vmem:[%s1 + $0x14] sm:$0xf]
  %v34 = vld [vmem:[%s1 + $0x18] sm:$0xf]
  %v35 = vld [vmem:[%s1 + $0x1c] sm:$0xf]
  %v36 = vld [vmem:[%s1 + $0x20] sm:$0xf]
  %v37 = vld [vmem:[%s1 + $0x24] sm:$0xf]
  %v38 = vld [vmem:[%s1 + $0x28] sm:$0xf]
  %v39 = vld [vmem:[%s1 + $0x2c] sm:$0xf]
  %v40 = vld [vmem:[%s1 + $0x30] sm:$0xf]
  %v41 = vld [vmem:[%s1 + $0x34] sm:$0xf]
  %v42 = vld [vmem:[%s1 + $0x38] sm:$0xf]
  %v43 = vld [vmem:[%s1 + $0x3c] sm:$0xf]
  %v44 = vld [vmem:[%s1 + $0x40] sm:$0xf]
  %v45 = vld [vmem:[%s1 + $0x44] sm:$0xf]
  %v46 = vld [vmem:[%s1 + $0x48] sm:$0xf]
  %v47 = vld [vmem:[%s1 + $0x4c] sm:$0xf]
  %v48 = vld [vmem:[%s1 + $0x50] sm:$0xf]
  %v49 = vld [vmem:[%s1 + $0x54] sm:$0xf]
  %v50 = vld [vmem:[%s1 + $0x58] sm:$0xf]
  %v51 = vld [vmem:[%s1 + $0x5c] sm:$0xf]
  %v52 = vld [vmem:[%s1 + $0x60] sm:$0xf]
  %v53 = vld [vmem:[%s1 + $0x64] sm:$0xf]
  %v54 = vld [vmem:[%s1 + $0x68] sm:$0xf]
  %v55 = vld [vmem:[%s1 + $0x6c] sm:$0xf]
  %v56 = vld [vmem:[%s1 + $0x70] sm:$0xf]
  %v57 = vld [vmem:[%s1 + $0x74] sm:$0xf]
  %v58 = vld [vmem:[%s1 + $0x78] sm:$0xf]
  %v59 = vld [vmem:[%s1 + $0x7c] sm:$0xf]
  %v60 = vld [vmem:[%s1 + $0x80] sm:$0xf]
  %v61 = vld [vmem:[%s1 + $0x84] sm:$0xf]
  %v62 = vld [vmem:[%s1 + $0x88] sm:$0xf]
  %v63 = vld [vmem:[%s1 + $0x8c] sm:$0xf]
  %v64 = vld [vmem:[%s1 + $0x90] sm:$0xf]
  %v65 = vld [vmem:[%s1 + $0x94] sm:$0xf]
  %v66 = vld [vmem:[%s1 + $0x98] sm:$0xf]
  %v67 = vld [vmem:[%s1 + $0x9c] sm:$0xf]
  %v68 = vld [vmem:[%s1 + $0xa0] sm:$0xf]
  %v69 = vld [vmem:[%s1 + $0xa4] sm:$0xf]
  %v70 = vld [vmem:[%s1 + $0xa8] sm:$0xf]
  %v71 = vld [vmem:[%s1 + $0xac] sm:$0xf]
  %v72 = vld [vmem:[%s1 + $0xb0] sm:$0xf]
  %v73 = vld [vmem:[%s1 + $0xb4] sm:$0xf]
  %v74 = vld [vmem:[%s1 + $0xb8] sm:$0xf]
  %v75 = vld [vmem:[%s1 + $0xbc] sm:$0xf]
  %v76 = vld [vmem:[%s1 + $0xc0] sm:$0xf]
  %v77 = vld [vmem:[%s1 + $0xc4] sm:$0xf]
  %v78 = vld [vmem:[%s1 + $0xc8] sm:$0xf]
  %v79 = vld [vmem:[%s1 + $0xcc] sm:$0xf]
  %v80 = vld [vmem:[%s1 + $0xd0] sm:$0xf]
  %v81 = vld [vmem:[%s1 + $0xd4] sm:$0xf]
  %v82 = vld [vmem:[%s1 + $0xd8] sm:$0xf]
  %v83 = vld [vmem:[%s1 + $0xdc] sm:$0xf]
  %v84 = vld [vmem:[%s1 + $0xe0] sm:$0xf]
  %v85 = vld [vmem:[%s1 + $0xe4] sm:$0xf]
  %v86 = vld [vmem:[%s1 + $0xe8] sm:$0xf]
  %v87 = vld [vmem:[%s1 + $0xec] sm:$0xf]
  %v88 = vld [vmem:[%s1 + $0xf0] sm:$0xf]
  %v89 = vld [vmem:[%s1 + $0xf4] sm:$0xf]
  %v90 = vld [vmem:[%s1 + $0xf8] sm:$0xf]
  %v91 = vld [vmem:[%s1 + $0xfc] sm:$0xf]
  %v92 = vld [vmem:[%s2] sm:$0x1]
  %v94 = vlaneseq
  %v95 = vshrl.u32 %v94, 7
  %v96 = vsub.s32 0, %v95
  %v97 = vrot.slane %v92, %v96
  %v101 = vunpack.c.l.s4 1966171168
  %v102 = vunpack.c.0.s8 %v101
  %v103 = vlaneseq
  %v104 = vshrl.u32 %v103, 7
  %v105 = vsub.s32 %v102, %v104
  %v106 = vrot.slane %v27, %v105
  %v107 = vcombine.high %v106, %v106
  %v109 = vunpack.c.l.s4 1966171168
  %v110 = vunpack.c.0.s8 %v109
  %v111 = vlaneseq
  %v112 = vshrl.u32 %v111, 7
  %v113 = vsub.s32 %v110, %v112
  %v114 = vrot.slane %v106, %v113
  %v116 = vunpack.c.l.s4 1966171168
  %v117 = vunpack.c.0.s8 %v116
  %v118 = vlaneseq
  %v119 = vshrl.u32 %v118, 7
  %v120 = vsub.s32 %v117, %v119
  %v121 = vrot.slane %v107, %v120
  %v122 = vcombine.high %v114, %v114
  %v123 = vcombine.high %v121, %v121
  %v192 = vunpack.c.l.b16 %v28
  %v193 = vunpack.c.l.b16 %v29
  %v194 = vunpack.c.l.b16 %v30
  %v195 = vunpack.c.l.b16 %v31
  %v196 = vunpack.c.l.b16 %v32
  %v197 = vunpack.c.l.b16 %v33
  %v198 = vunpack.c.l.b16 %v34
  %v199 = vunpack.c.l.b16 %v35
  %v200 = vunpack.c.l.b16 %v36
  %v201 = vunpack.c.l.b16 %v37
  %v202 = vunpack.c.l.b16 %v38
  %v203 = vunpack.c.l.b16 %v39
  %v204 = vunpack.c.l.b16 %v40
  %v205 = vunpack.c.l.b16 %v41
  %v206 = vunpack.c.l.b16 %v42
  %v207 = vunpack.c.l.b16 %v43
  %v208 = vunpack.c.l.b16 %v44
  %v209 = vunpack.c.l.b16 %v45
  %v210 = vunpack.c.l.b16 %v46
  %v211 = vunpack.c.l.b16 %v47
  %v212 = vunpack.c.l.b16 %v48
  %v213 = vunpack.c.l.b16 %v49
  %v214 = vunpack.c.l.b16 %v50
  %v215 = vunpack.c.l.b16 %v51
  %v216 = vunpack.c.l.b16 %v52
  %v217 = vunpack.c.l.b16 %v53
  %v218 = vunpack.c.l.b16 %v54
  %v219 = vunpack.c.l.b16 %v55
  %v220 = vunpack.c.l.b16 %v56
  %v221 = vunpack.c.l.b16 %v57
  %v222 = vunpack.c.l.b16 %v58
  %v223 = vunpack.c.l.b16 %v59
  %v224 = vunpack.c.l.b16 %v60
  %v225 = vunpack.c.l.b16 %v61
  %v226 = vunpack.c.l.b16 %v62
  %v227 = vunpack.c.l.b16 %v63
  %v228 = vunpack.c.l.b16 %v64
  %v229 = vunpack.c.l.b16 %v65
  %v230 = vunpack.c.l.b16 %v66
  %v231 = vunpack.c.l.b16 %v67
  %v232 = vunpack.c.l.b16 %v68
  %v233 = vunpack.c.l.b16 %v69
  %v234 = vunpack.c.l.b16 %v70
  %v235 = vunpack.c.l.b16 %v71
  %v236 = vunpack.c.l.b16 %v72
  %v237 = vunpack.c.l.b16 %v73
  %v238 = vunpack.c.l.b16 %v74
  %v239 = vunpack.c.l.b16 %v75
  %v240 = vunpack.c.l.b16 %v76
  %v241 = vunpack.c.l.b16 %v77
  %v242 = vunpack.c.l.b16 %v78
  %v243 = vunpack.c.l.b16 %v79
  %v244 = vunpack.c.l.b16 %v80
  %v245 = vunpack.c.l.b16 %v81
  %v246 = vunpack.c.l.b16 %v82
  %v247 = vunpack.c.l.b16 %v83
  %v248 = vunpack.c.l.b16 %v84
  %v249 = vunpack.c.l.b16 %v85
  %v250 = vunpack.c.l.b16 %v86
  %v251 = vunpack.c.l.b16 %v87
  %v252 = vunpack.c.l.b16 %v88
  %v253 = vunpack.c.l.b16 %v89
  %v254 = vunpack.c.l.b16 %v90
  %v255 = vunpack.c.l.b16 %v91
  %v256 = vpack.c.b16 %v193, %v192
  %v257 = vpack.c.b16 %v195, %v194
  %v258 = vpack.c.b16 %v197, %v196
  %v259 = vpack.c.b16 %v199, %v198
  %v260 = vpack.c.b16 %v201, %v200
  %v261 = vpack.c.b16 %v203, %v202
  %v262 = vpack.c.b16 %v205, %v204
  %v263 = vpack.c.b16 %v207, %v206
  %v264 = vpack.c.b16 %v209, %v208
  %v265 = vpack.c.b16 %v211, %v210
  %v266 = vpack.c.b16 %v213, %v212
  %v267 = vpack.c.b16 %v215, %v214
  %v268 = vpack.c.b16 %v217, %v216
  %v269 = vpack.c.b16 %v219, %v218
  %v270 = vpack.c.b16 %v221, %v220
  %v271 = vpack.c.b16 %v223, %v222
  %v272 = vpack.c.b16 %v225, %v224
  %v273 = vpack.c.b16 %v227, %v226
  %v274 = vpack.c.b16 %v229, %v228
  %v275 = vpack.c.b16 %v231, %v230
  %v276 = vpack.c.b16 %v233, %v232
  %v277 = vpack.c.b16 %v235, %v234
  %v278 = vpack.c.b16 %v237, %v236
  %v279 = vpack.c.b16 %v239, %v238
  %v280 = vpack.c.b16 %v241, %v240
  %v281 = vpack.c.b16 %v243, %v242
  %v282 = vpack.c.b16 %v245, %v244
  %v283 = vpack.c.b16 %v247, %v246
  %v284 = vpack.c.b16 %v249, %v248
  %v285 = vpack.c.b16 %v251, %v250
  %v286 = vpack.c.b16 %v253, %v252
  %v287 = vpack.c.b16 %v255, %v254
  %320 = vmatprep.subr.bf16.mxu0 0
  %321 = vmatpush1.bf16.msra.mxu0 %v256
  %322 = vmatprep.subr.bf16.mxu0 0
  %323 = vmatpush1.bf16.msra.mxu0 %v257
  %324 = vmatprep.subr.bf16.mxu0 0
  %325 = vmatpush1.bf16.msra.mxu0 %v258
  %326 = vmatprep.subr.bf16.mxu0 0
  %327 = vmatpush1.bf16.msra.mxu0 %v259
  %328 = vmatprep.subr.bf16.mxu0 0
  %329 = vmatpush1.bf16.msra.mxu0 %v260
  %330 = vmatprep.subr.bf16.mxu0 0
  %331 = vmatpush1.bf16.msra.mxu0 %v261
  %332 = vmatprep.subr.bf16.mxu0 0
  %333 = vmatpush1.bf16.msra.mxu0 %v262
  %334 = vmatprep.subr.bf16.mxu0 0
  %335 = vmatpush1.bf16.msra.mxu0 %v263
  %336 = vmatprep.subr.bf16.mxu0 0
  %337 = vmatpush1.bf16.msra.mxu0 %v264
  %338 = vmatprep.subr.bf16.mxu0 0
  %339 = vmatpush1.bf16.msra.mxu0 %v265
  %340 = vmatprep.subr.bf16.mxu0 0
  %341 = vmatpush1.bf16.msra.mxu0 %v266
  %342 = vmatprep.subr.bf16.mxu0 0
  %343 = vmatpush1.bf16.msra.mxu0 %v267
  %344 = vmatprep.subr.bf16.mxu0 0
  %345 = vmatpush1.bf16.msra.mxu0 %v268
  %346 = vmatprep.subr.bf16.mxu0 0
  %347 = vmatpush1.bf16.msra.mxu0 %v269
  %348 = vmatprep.subr.bf16.mxu0 0
  %349 = vmatpush1.bf16.msra.mxu0 %v270
  %350 = vmatprep.subr.bf16.mxu0 0
  %351 = vmatpush1.bf16.msra.mxu0 %v271
  %352 = vmatprep.mubr.bf16.mxu0 %v121
  %353 = vmatmul.mubr.bf16.gmra.mrb[0].mxu0 %v114
  %v354 = vpop.f32.mrb[0].mxu0
  %v355 = vadd.f32 %v97, %v354
  %v356 = vpop.f32.mrb[0].mxu0
  %v357 = vpop.f32.mrb[0].mxu0
  %v358 = vpop.f32.mrb[0].mxu0
  %359 = vdwg.mxu0
  %360 = vmatprep.subr.bf16.mxu0 0
  %361 = vmatpush1.bf16.msra.mxu0 %v272
  %362 = vmatprep.subr.bf16.mxu0 0
  %363 = vmatpush1.bf16.msra.mxu0 %v273
  %364 = vmatprep.subr.bf16.mxu0 0
  %365 = vmatpush1.bf16.msra.mxu0 %v274
  %366 = vmatprep.subr.bf16.mxu0 0
  %367 = vmatpush1.bf16.msra.mxu0 %v275
  %368 = vmatprep.subr.bf16.mxu0 0
  %369 = vmatpush1.bf16.msra.mxu0 %v276
  %370 = vmatprep.subr.bf16.mxu0 0
  %371 = vmatpush1.bf16.msra.mxu0 %v277
  %372 = vmatprep.subr.bf16.mxu0 0
  %373 = vmatpush1.bf16.msra.mxu0 %v278
  %374 = vmatprep.subr.bf16.mxu0 0
  %375 = vmatpush1.bf16.msra.mxu0 %v279
  %376 = vmatprep.subr.bf16.mxu0 0
  %377 = vmatpush1.bf16.msra.mxu0 %v280
  %378 = vmatprep.subr.bf16.mxu0 0
  %379 = vmatpush1.bf16.msra.mxu0 %v281
  %380 = vmatprep.subr.bf16.mxu0 0
  %381 = vmatpush1.bf16.msra.mxu0 %v282
  %382 = vmatprep.subr.bf16.mxu0 0
  %383 = vmatpush1.bf16.msra.mxu0 %v283
  %384 = vmatprep.subr.bf16.mxu0 0
  %385 = vmatpush1.bf16.msra.mxu0 %v284
  %386 = vmatprep.subr.bf16.mxu0 0
  %387 = vmatpush1.bf16.msra.mxu0 %v285
  %388 = vmatprep.subr.bf16.mxu0 0
  %389 = vmatpush1.bf16.msra.mxu0 %v286
  %390 = vmatprep.subr.bf16.mxu0 0
  %391 = vmatpush1.bf16.msra.mxu0 %v287
  %392 = vmatprep.mubr.bf16.mxu0 %v123
  %393 = vmatmul.mubr.bf16.gmra.mrb[0].mxu0 %v122
  %v394 = vpop.f32.mrb[0].mxu0
  %v395 = vadd.f32 %v355, %v394
  %v396 = vpop.f32.mrb[0].mxu0
  %v397 = vpop.f32.mrb[0].mxu0
  %v398 = vpop.f32.mrb[0].mxu0
  %399 = vdwg.mxu0
  %v400 = vmax.f32 %v395, 0.0
  %v401 = vpack.c.bf16 %v400, %v400
  %v402 = vld [vmem:[%s3] sm:$0xf]
  %v403 = vld [vmem:[%s3 + $0x4] sm:$0xf]
  %v404 = vld [vmem:[%s3 + $0x8] sm:$0xf]
  %v405 = vld [vmem:[%s3 + $0xc] sm:$0xf]
  %v406 = vld [vmem:[%s3 + $0x10] sm:$0xf]
  %v407 = vld [vmem:[%s3 + $0x14] sm:$0xf]
  %v408 = vld [vmem:[%s3 + $0x18] sm:$0xf]
  %v409 = vld [vmem:[%s3 + $0x1c] sm:$0xf]
  %v410 = vld [vmem:[%s4] sm:$0x1]
  %v412 = vlaneseq
  %v413 = vshrl.u32 %v412, 7
  %v414 = vsub.s32 0, %v413
  %v415 = vrot.slane %v410, %v414
  %v425 = vunpack.c.l.b16 %v402
  %v426 = vunpack.c.l.b16 %v403
  %v427 = vunpack.c.l.b16 %v404
  %v428 = vunpack.c.l.b16 %v405
  %v429 = vunpack.c.l.b16 %v406
  %v430 = vunpack.c.l.b16 %v407
  %v431 = vunpack.c.l.b16 %v408
  %v432 = vunpack.c.l.b16 %v409
  %v433 = vpack.c.b16 %v426, %v425
  %v434 = vpack.c.b16 %v428, %v427
  %v435 = vpack.c.b16 %v430, %v429
  %v436 = vpack.c.b16 %v432, %v431
  %vm441 = vcmask 523264
  %v443 = vsel %vm441, %v401, 0
  %445 = vmatprep.subr.bf16.mxu0 0
  %446 = vmatpush1.bf16.msra.mxu0 %v433
  %447 = vmatprep.subr.bf16.mxu0 0
  %448 = vmatpush1.bf16.msra.mxu0 %v434
  %449 = vmatprep.subr.bf16.mxu0 0
  %450 = vmatpush1.bf16.msra.mxu0 %v435
  %451 = vmatprep.subr.bf16.mxu0 0
  %452 = vmatpush1.bf16.msra.mxu0 %v436
  %453 = vmatprep.subr.bf16.mxu0 0
  %454 = vmatpush1.bf16.msra.mxu0 0
  %455 = vmatprep.subr.bf16.mxu0 0
  %456 = vmatpush1.bf16.msra.mxu0 0
  %457 = vmatprep.subr.bf16.mxu0 0
  %458 = vmatpush1.bf16.msra.mxu0 0
  %459 = vmatprep.subr.bf16.mxu0 0
  %460 = vmatpush1.bf16.msra.mxu0 0
  %461 = vmatprep.subr.bf16.mxu0 0
  %462 = vmatpush1.bf16.msra.mxu0 0
  %463 = vmatprep.subr.bf16.mxu0 0
  %464 = vmatpush1.bf16.msra.mxu0 0
  %465 = vmatprep.subr.bf16.mxu0 0
  %466 = vmatpush1.bf16.msra.mxu0 0
  %467 = vmatprep.subr.bf16.mxu0 0
  %468 = vmatpush1.bf16.msra.mxu0 0
  %469 = vmatprep.subr.bf16.mxu0 0
  %470 = vmatpush1.bf16.msra.mxu0 0
  %471 = vmatprep.subr.bf16.mxu0 0
  %472 = vmatpush1.bf16.msra.mxu0 0
  %473 = vmatprep.subr.bf16.mxu0 0
  %474 = vmatpush1.bf16.msra.mxu0 0
  %475 = vmatprep.subr.bf16.mxu0 0
  %476 = vmatpush1.bf16.msra.mxu0 0
  %477 = vmatprep.mubr.bf16.mxu0 0
  %478 = vmatmul.mubr.bf16.gmra.mrb[0].mxu0 %v443
  %v479 = vpop.f32.mrb[0].mxu0
  %v480 = vadd.f32 %v415, %v479
  %v481 = vpop.f32.mrb[0].mxu0
  %v482 = vpop.f32.mrb[0].mxu0
  %v483 = vpop.f32.mrb[0].mxu0
  %484 = vdwg.mxu0
  %v485 = vmax.f32 %v480, 0.0
  %v486 = vpack.c.bf16 %v485, %v485
  %v487 = vld [vmem:[%s5] sm:$0xf]
  %v488 = vld [vmem:[%s5 + $0x4] sm:$0xf]
  %v489 = vld [vmem:[%s5 + $0x8] sm:$0xf]
  %v490 = vld [vmem:[%s5 + $0xc] sm:$0xf]
  %v491 = vld [vmem:[%s5 + $0x10] sm:$0xf]
  %v492 = vld [vmem:[%s5 + $0x14] sm:$0xf]
  %v493 = vld [vmem:[%s5 + $0x18] sm:$0xf]
  %v494 = vld [vmem:[%s5 + $0x1c] sm:$0xf]
  %v495 = vld [vmem:[%s6] sm:$0x1]
  %v497 = vlaneseq
  %v498 = vshrl.u32 %v497, 7
  %v499 = vsub.s32 0, %v498
  %v500 = vrot.slane %v495, %v499
  %v510 = vunpack.c.l.b16 %v487
  %v511 = vunpack.c.l.b16 %v488
  %v512 = vunpack.c.l.b16 %v489
  %v513 = vunpack.c.l.b16 %v490
  %v514 = vunpack.c.l.b16 %v491
  %v515 = vunpack.c.l.b16 %v492
  %v516 = vunpack.c.l.b16 %v493
  %v517 = vunpack.c.l.b16 %v494
  %v518 = vpack.c.b16 %v511, %v510
  %v519 = vpack.c.b16 %v513, %v512
  %v520 = vpack.c.b16 %v515, %v514
  %v521 = vpack.c.b16 %v517, %v516
  %v527 = vsel %vm441, %v486, 0
  %529 = vmatprep.subr.bf16.mxu0 0
  %530 = vmatpush1.bf16.msra.mxu0 %v518
  %531 = vmatprep.subr.bf16.mxu0 0
  %532 = vmatpush1.bf16.msra.mxu0 %v519
  %533 = vmatprep.subr.bf16.mxu0 0
  %534 = vmatpush1.bf16.msra.mxu0 %v520
  %535 = vmatprep.subr.bf16.mxu0 0
  %536 = vmatpush1.bf16.msra.mxu0 %v521
  %537 = vmatprep.subr.bf16.mxu0 0
  %538 = vmatpush1.bf16.msra.mxu0 0
  %539 = vmatprep.subr.bf16.mxu0 0
  %540 = vmatpush1.bf16.msra.mxu0 0
  %541 = vmatprep.subr.bf16.mxu0 0
  %542 = vmatpush1.bf16.msra.mxu0 0
  %543 = vmatprep.subr.bf16.mxu0 0
  %544 = vmatpush1.bf16.msra.mxu0 0
  %545 = vmatprep.subr.bf16.mxu0 0
  %546 = vmatpush1.bf16.msra.mxu0 0
  %547 = vmatprep.subr.bf16.mxu0 0
  %548 = vmatpush1.bf16.msra.mxu0 0
  %549 = vmatprep.subr.bf16.mxu0 0
  %550 = vmatpush1.bf16.msra.mxu0 0
  %551 = vmatprep.subr.bf16.mxu0 0
  %552 = vmatpush1.bf16.msra.mxu0 0
  %553 = vmatprep.subr.bf16.mxu0 0
  %554 = vmatpush1.bf16.msra.mxu0 0
  %555 = vmatprep.subr.bf16.mxu0 0
  %556 = vmatpush1.bf16.msra.mxu0 0
  %557 = vmatprep.subr.bf16.mxu0 0
  %558 = vmatpush1.bf16.msra.mxu0 0
  %559 = vmatprep.subr.bf16.mxu0 0
  %560 = vmatpush1.bf16.msra.mxu0 0
  %561 = vmatprep.mubr.bf16.mxu0 0
  %562 = vmatmul.mubr.bf16.gmra.mrb[0].mxu0 %v527
  %v563 = vpop.f32.mrb[0].mxu0
  %v564 = vadd.f32 %v500, %v563
  %v565 = vpop.f32.mrb[0].mxu0
  %v566 = vpop.f32.mrb[0].mxu0
  %v567 = vpop.f32.mrb[0].mxu0
  %568 = vdwg.mxu0
  %v569 = vmax.f32 %v564, 0.0
  %v570 = vand.u32 2147483647, %v564
  %v571 = vsub.f32 0.0, %v570
  %v572 = vmul.f32 %v571, 1.442695
  %v573 = vpow.pop %v572
  %v574 = vadd.f32 %v573, 1.0
  %v575 = vlog2.pop %v574
  %v576 = vmul.f32 %v575, 0.6931472
  %v577 = vadd.f32 %v569, %v576
  %v578 = vadd.f32 %v577, 1.0
  %v579 = vlaneseq
  %v580 = vand.u32 %v579, 127
  %vm581 = vcmp.eq.s32.totalorder %v580, 0
  %v582 = vsel %vm581, %v564, %v578
  %vm583 = vcmask 50176
  %584 = vst.msk [vmem:[%s7] sm:$0x3] %vm583, %v582
  // Predicated region
  $region30: #{net_forward.7} parent=0 // pred_check
    _
  $region31: #{net_forward.7} parent=0 // pred_check_branch
    %586 = sbr.rel (0) target = $region33
  $region32: #{net_forward.7} parent=0 // pred_region
    _
  $region33: #{net_forward.7} parent=0 // pred_fallthru
    _
  // Predicated region
  $region34: #{net_forward.7} parent=0 // pred_check
    _
  $region35: #{net_forward.7} parent=0 // pred_check_branch
    %588 = sbr.rel (0) target = $region37
  $region36: #{net_forward.7} parent=0 // pred_region
    _
  $region37: #{net_forward.7} parent=0 // pred_fallthru
    _

</llo_original>
